<compile_context>
chip_gen: v6e
topology: v6e:2x2x1
jax: 0.10.0
libtpu: 0.0.40
codegen_flags: <defaults>
</compile_context>

<pallas_src>
import functools
import numpy as np
import jax
import jax.numpy as jnp
from jax.experimental import pallas as pl
from jax.experimental.pallas import tpu as pltpu


def _ge_kernel(n_levels, relu_flags, x_ref, *rest):
    # rest = [R_0, M_0, b_0, ..., R_{L-1}, M_{L-1}, b_{L-1}, out_ref]
    out_ref = rest[-1]
    x = x_ref[...]                              # (H, N*C*W) lane-dense slab, float32
    y = x
    for l in range(n_levels):
        R = rest[3 * l][...]                    # (3, rows_out, rows_in)   row select (pad folded)
        M = rest[3 * l + 1][...]                # (3, lanes_in, lanes_out) col select * w * bn_scale
        b = rest[3 * l + 2][...]                # (1, lanes_out)           bn bias row
        acc = None
        for di in range(3):                     # 3 vertical taps of the 3x3 depthwise conv
            z = jnp.dot(R[di], y, preferred_element_type=jnp.float32)
            t = jnp.dot(z, M[di], preferred_element_type=jnp.float32)
            acc = t if acc is None else acc + t
        y = acc + b                             # sublane-broadcast bias add
        if relu_flags[l]:
            y = jnp.maximum(y, 0.0)
    out_ref[...] = x * jax.nn.sigmoid(y)        # gating (upsample already folded into level L-1)


def init_geblock_params(key, channels):
    """Deterministic params for the 3 Downblocks of extent=8 (dw-conv + BN, relu on 0,1)."""
    keys = jax.random.split(key, 15)
    eps = 1e-5
    blocks = []
    for b in range(3):
        kw, kg, kb, km, kv = keys[5 * b:5 * b + 5]
        w = 0.1 * jax.random.normal(kw, (channels, 3, 3), jnp.float32)      # dwconv (C,1,3,3)
        gamma = 0.5 + jax.random.uniform(kg, (channels,), jnp.float32)
        beta = 0.1 * jax.random.normal(kb, (channels,), jnp.float32)
        rmean = 0.1 * jax.random.normal(km, (channels,), jnp.float32)
        rvar = 0.5 + jax.random.uniform(kv, (channels,), jnp.float32)
        scale = gamma / jnp.sqrt(rvar + eps)
        bias = beta - rmean * scale
        blocks.append(dict(w=w, scale=scale, bias=bias, relu=(b < 2)))
    return blocks


def _bias_row(bias, n, width):
    """(1, n*C*width) row with bias[c] replicated across each (sample, channel) lane block."""
    return np.tile(np.repeat(np.asarray(bias, np.float32), width), n)[None, :]


def build_kernel_operands(blocks, N, C, H):
    """Fold pad / conv weights / BN / nearest-upsample into lane-dense selection matrices."""
    NC = N * C
    S = H
    levels = []        # [R(3,So,S), colmat(3,C,S,So), bias(C,), relu, S_in, S_out]
    for blk in blocks:
        if S // 2 == 1:                          # Downblock early-return (identity)
            continue
        So = (S - 1) // 2 + 1                    # stride-2, k=3, pad=1 output size
        w = np.asarray(blk['w'], np.float32)
        scale = np.asarray(blk['scale'], np.float32)
        R = np.zeros((3, So, S), np.float32)
        colmat = np.zeros((3, C, S, So), np.float32)
        for di in range(3):
            for i in range(So):
                r = 2 * i + di - 1               # pad=1 offset (zero-padding => row left zero)
                if 0 <= r < S:
                    R[di, i, r] = 1.0
            for dj in range(3):
                for j in range(So):
                    col = 2 * j + dj - 1
                    if 0 <= col < S:
                        colmat[di, :, col, j] += scale * w[:, di, dj]
        levels.append([R, colmat, np.asarray(blk['bias'], np.float32), bool(blk['relu']), S, So])
        S = So

    if not levels:                               # every Downblock early-returned: gate is sigmoid(x)
        R = np.zeros((3, H, H), np.float32)
        R[0] = np.eye(H, dtype=np.float32)
        colmat = np.zeros((3, C, H, H), np.float32)
        colmat[0] = np.eye(H, dtype=np.float32)[None]
        levels.append([R, colmat, np.zeros((C,), np.float32), False, H, H])
        S = H

    # Fold the nearest-neighbor upsample (one-hot row/col selections) into the last level.
    s = S
    Urow = np.zeros((H, s), np.float32)
    Ucol = np.zeros((s, H), np.float32)
    for i in range(H):
        src = (i * s) // H
        Urow[i, src] = 1.0
        Ucol[src, i] = 1.0
    R, colmat, bias, relu, S_in, _ = levels[-1]
    R = np.einsum('ij,djk->dik', Urow, R)              # (3, H, S_in)
    colmat = np.einsum('dcij,jk->dcik', colmat, Ucol)  # (3, C, S_in, H)
    levels[-1] = [R, colmat, bias, relu, S_in, H]

    # Expand per-channel column matrices into block-diagonal lane operands + bias rows.
    R_list, M_list, bias_list, relu_flags = [], [], [], []
    for R, colmat, bias, relu, S_in, S_out in levels:
        L_in, L_out = NC * S_in, NC * S_out
        M = np.zeros((3, L_in, L_out), np.float32)
        for q in range(NC):                            # lane block q = n*C + c
            c = q % C
            M[:, q * S_in:(q + 1) * S_in, q * S_out:(q + 1) * S_out] = colmat[:, c]
        R_list.append(R)
        M_list.append(M)
        bias_list.append(_bias_row(bias, N, S_out))
        relu_flags.append(relu)
    return R_list, M_list, bias_list, relu_flags


def geblock_forward(x, blocks):
    N, C, H, W = x.shape
    assert H == W, "GEBlock kernel assumes square spatial dims"
    R_list, M_list, bias_list, relu_flags = build_kernel_operands(blocks, N, C, H)
    L = len(R_list)
    lanes = N * C * W

    # Lane-dense packing: (N, C, H, W) -> (H, N*C*W). Last dim = 128 at the reference
    # shape, so every store is full-lane and the whole batch runs in one grid step.
    x2 = jnp.transpose(x.astype(jnp.float32), (2, 0, 1, 3)).reshape(H, lanes)

    operands = [x2]
    in_specs = [pl.BlockSpec((H, lanes), lambda g: (0, 0))]
    for l in range(L):
        for arr in (R_list[l], M_list[l], bias_list[l]):
            arr = jnp.asarray(arr)
            operands.append(arr)
            in_specs.append(pl.BlockSpec(arr.shape, lambda g, nd=arr.ndim: (0,) * nd))

    kernel = functools.partial(_ge_kernel, L, tuple(relu_flags))
    out2 = pl.pallas_call(
        kernel,
        out_shape=jax.ShapeDtypeStruct((H, lanes), jnp.float32),
        grid=(1,),
        in_specs=in_specs,
        out_specs=pl.BlockSpec((H, lanes), lambda g: (0, 0)),
        compiler_params=pltpu.CompilerParams(dimension_semantics=("arbitrary",)),
    )(*operands)

    return out2.reshape(H, N, C, W).transpose(1, 2, 0, 3)


def geblock_reference(x, blocks):
    """Pure-JAX reference mirroring the PyTorch forward."""
    N, C, H, W = x.shape
    y = x
    for blk in blocks:
        S = y.shape[-1]
        if S // 2 == 1:
            continue
        w = blk['w'].reshape(C, 1, 3, 3)
        y = jax.lax.conv_general_dilated(
            y, w, window_strides=(2, 2), padding=((1, 1), (1, 1)),
            feature_group_count=C,
            dimension_numbers=('NCHW', 'OIHW', 'NCHW'))
        y = y * blk['scale'][None, :, None, None] + blk['bias'][None, :, None, None]
        if blk['relu']:
            y = jnp.maximum(y, 0.0)
    s = y.shape[-1]
    idx = (np.arange(H) * s) // H
    up = y[:, :, idx, :][:, :, :, idx]
    return x * jax.nn.sigmoid(up)


if __name__ == "__main__":
    key = jax.random.PRNGKey(0)
    kx, kp = jax.random.split(key)
    N, C, H, W = 2, 4, 16, 16
    x = jax.random.normal(kx, (N, C, H, W), jnp.float32)
    blocks = init_geblock_params(kp, C)

    out = jax.block_until_ready(geblock_forward(x, blocks))
    ref = jax.block_until_ready(geblock_reference(x, blocks))
    np.testing.assert_allclose(np.asarray(out), np.asarray(ref), rtol=1e-4, atol=1e-4)
    print("KERNEL_OK")
</pallas_src>

<mosaic_0001>
module attributes {stable_mosaic.version = 11 : i64} {
  func.func @_ge_kernel(%arg0: i32, %arg1: memref<16x128xf32, #tpu.memory_space<vmem>>, %arg2: memref<3x8x16xf32, #tpu.memory_space<vmem>>, %arg3: memref<3x128x64xf32, #tpu.memory_space<vmem>>, %arg4: memref<1x64xf32, #tpu.memory_space<vmem>>, %arg5: memref<3x4x8xf32, #tpu.memory_space<vmem>>, %arg6: memref<3x64x32xf32, #tpu.memory_space<vmem>>, %arg7: memref<1x32xf32, #tpu.memory_space<vmem>>, %arg8: memref<3x16x4xf32, #tpu.memory_space<vmem>>, %arg9: memref<3x32x128xf32, #tpu.memory_space<vmem>>, %arg10: memref<1x128xf32, #tpu.memory_space<vmem>>, %arg11: memref<16x128xf32, #tpu.memory_space<vmem>>) attributes {dimension_semantics = [#tpu.dimension_semantics<arbitrary>], iteration_bounds = array<i64: 1>, scalar_prefetch = 0 : i64, scratch_operands = 0 : i64, tpu.core_type = #tpu.core_type<tc>, window_params = [{pipeline_mode = #tpu.pipeline_mode<synchronous>, transform_indices = @transform_0, window_bounds = array<i64: 16, 128>}, {pipeline_mode = #tpu.pipeline_mode<synchronous>, transform_indices = @transform_1, window_bounds = array<i64: 3, 8, 16>}, {pipeline_mode = #tpu.pipeline_mode<synchronous>, transform_indices = @transform_2, window_bounds = array<i64: 3, 128, 64>}, {pipeline_mode = #tpu.pipeline_mode<synchronous>, transform_indices = @transform_3, window_bounds = array<i64: 1, 64>}, {pipeline_mode = #tpu.pipeline_mode<synchronous>, transform_indices = @transform_4, window_bounds = array<i64: 3, 4, 8>}, {pipeline_mode = #tpu.pipeline_mode<synchronous>, transform_indices = @transform_5, window_bounds = array<i64: 3, 64, 32>}, {pipeline_mode = #tpu.pipeline_mode<synchronous>, transform_indices = @transform_6, window_bounds = array<i64: 1, 32>}, {pipeline_mode = #tpu.pipeline_mode<synchronous>, transform_indices = @transform_7, window_bounds = array<i64: 3, 16, 4>}, {pipeline_mode = #tpu.pipeline_mode<synchronous>, transform_indices = @transform_8, window_bounds = array<i64: 3, 32, 128>}, {pipeline_mode = #tpu.pipeline_mode<synchronous>, transform_indices = @transform_9, window_bounds = array<i64: 1, 128>}, {pipeline_mode = #tpu.pipeline_mode<synchronous>, transform_indices = @transform_10, window_bounds = array<i64: 16, 128>}]} {
    %c0 = arith.constant 0 : index
    %c0_0 = arith.constant 0 : index
    %0 = vector.load %arg1[%c0, %c0_0] : memref<16x128xf32, #tpu.memory_space<vmem>>, vector<16x128xf32>
    %c0_1 = arith.constant 0 : index
    %c0_2 = arith.constant 0 : index
    %c0_3 = arith.constant 0 : index
    %1 = vector.load %arg2[%c0_1, %c0_2, %c0_3] : memref<3x8x16xf32, #tpu.memory_space<vmem>>, vector<3x8x16xf32>
    %c0_4 = arith.constant 0 : index
    %c0_5 = arith.constant 0 : index
    %c0_6 = arith.constant 0 : index
    %2 = vector.load %arg3[%c0_4, %c0_5, %c0_6] : memref<3x128x64xf32, #tpu.memory_space<vmem>>, vector<3x128x64xf32>
    %c0_7 = arith.constant 0 : index
    %c0_8 = arith.constant 0 : index
    %3 = vector.load %arg4[%c0_7, %c0_8] : memref<1x64xf32, #tpu.memory_space<vmem>>, vector<1x64xf32>
    %4 = vector.extract_strided_slice %1 {offsets = [0, 0, 0], sizes = [1, 8, 16], strides = [1, 1, 1]} : vector<3x8x16xf32> to vector<1x8x16xf32>
    %5 = vector.shape_cast %4 : vector<1x8x16xf32> to vector<8x16xf32>
    %cst = arith.constant dense<0.000000e+00> : vector<8x128xf32>
    %6 = tpu.matmul %5, %0, %cst {dimension_numbers = #tpu.dot_dimension_numbers<[1], [0], [0], [1], [0, 0, 1, 1], [], []>} : vector<8x16xf32>, vector<16x128xf32>, vector<8x128xf32> -> vector<8x128xf32>
    %7 = vector.extract_strided_slice %2 {offsets = [0, 0, 0], sizes = [1, 128, 64], strides = [1, 1, 1]} : vector<3x128x64xf32> to vector<1x128x64xf32>
    %8 = vector.shape_cast %7 : vector<1x128x64xf32> to vector<128x64xf32>
    %cst_9 = arith.constant dense<0.000000e+00> : vector<8x64xf32>
    %9 = tpu.matmul %6, %8, %cst_9 {dimension_numbers = #tpu.dot_dimension_numbers<[1], [0], [0], [1], [0, 0, 1, 1], [], []>} : vector<8x128xf32>, vector<128x64xf32>, vector<8x64xf32> -> vector<8x64xf32>
    %10 = vector.extract_strided_slice %1 {offsets = [1, 0, 0], sizes = [1, 8, 16], strides = [1, 1, 1]} : vector<3x8x16xf32> to vector<1x8x16xf32>
    %11 = vector.shape_cast %10 : vector<1x8x16xf32> to vector<8x16xf32>
    %cst_10 = arith.constant dense<0.000000e+00> : vector<8x128xf32>
    %12 = tpu.matmul %11, %0, %cst_10 {dimension_numbers = #tpu.dot_dimension_numbers<[1], [0], [0], [1], [0, 0, 1, 1], [], []>} : vector<8x16xf32>, vector<16x128xf32>, vector<8x128xf32> -> vector<8x128xf32>
    %13 = vector.extract_strided_slice %2 {offsets = [1, 0, 0], sizes = [1, 128, 64], strides = [1, 1, 1]} : vector<3x128x64xf32> to vector<1x128x64xf32>
    %14 = vector.shape_cast %13 : vector<1x128x64xf32> to vector<128x64xf32>
    %cst_11 = arith.constant dense<0.000000e+00> : vector<8x64xf32>
    %15 = tpu.matmul %12, %14, %cst_11 {dimension_numbers = #tpu.dot_dimension_numbers<[1], [0], [0], [1], [0, 0, 1, 1], [], []>} : vector<8x128xf32>, vector<128x64xf32>, vector<8x64xf32> -> vector<8x64xf32>
    %16 = arith.addf %9, %15 : vector<8x64xf32>
    %17 = vector.extract_strided_slice %1 {offsets = [2, 0, 0], sizes = [1, 8, 16], strides = [1, 1, 1]} : vector<3x8x16xf32> to vector<1x8x16xf32>
    %18 = vector.shape_cast %17 : vector<1x8x16xf32> to vector<8x16xf32>
    %cst_12 = arith.constant dense<0.000000e+00> : vector<8x128xf32>
    %19 = tpu.matmul %18, %0, %cst_12 {dimension_numbers = #tpu.dot_dimension_numbers<[1], [0], [0], [1], [0, 0, 1, 1], [], []>} : vector<8x16xf32>, vector<16x128xf32>, vector<8x128xf32> -> vector<8x128xf32>
    %20 = vector.extract_strided_slice %2 {offsets = [2, 0, 0], sizes = [1, 128, 64], strides = [1, 1, 1]} : vector<3x128x64xf32> to vector<1x128x64xf32>
    %21 = vector.shape_cast %20 : vector<1x128x64xf32> to vector<128x64xf32>
    %cst_13 = arith.constant dense<0.000000e+00> : vector<8x64xf32>
    %22 = tpu.matmul %19, %21, %cst_13 {dimension_numbers = #tpu.dot_dimension_numbers<[1], [0], [0], [1], [0, 0, 1, 1], [], []>} : vector<8x128xf32>, vector<128x64xf32>, vector<8x64xf32> -> vector<8x64xf32>
    %23 = arith.addf %16, %22 : vector<8x64xf32>
    %24 = vector.broadcast %3 : vector<1x64xf32> to vector<8x64xf32>
    %25 = arith.addf %23, %24 : vector<8x64xf32>
    %cst_14 = arith.constant 0.000000e+00 : f32
    %26 = vector.broadcast %cst_14 : f32 to vector<8x64xf32>
    %27 = arith.maximumf %25, %26 : vector<8x64xf32>
    %c0_15 = arith.constant 0 : index
    %c0_16 = arith.constant 0 : index
    %c0_17 = arith.constant 0 : index
    %28 = vector.load %arg5[%c0_15, %c0_16, %c0_17] : memref<3x4x8xf32, #tpu.memory_space<vmem>>, vector<3x4x8xf32>
    %c0_18 = arith.constant 0 : index
    %c0_19 = arith.constant 0 : index
    %c0_20 = arith.constant 0 : index
    %29 = vector.load %arg6[%c0_18, %c0_19, %c0_20] : memref<3x64x32xf32, #tpu.memory_space<vmem>>, vector<3x64x32xf32>
    %c0_21 = arith.constant 0 : index
    %c0_22 = arith.constant 0 : index
    %30 = vector.load %arg7[%c0_21, %c0_22] : memref<1x32xf32, #tpu.memory_space<vmem>>, vector<1x32xf32>
    %31 = vector.extract_strided_slice %28 {offsets = [0, 0, 0], sizes = [1, 4, 8], strides = [1, 1, 1]} : vector<3x4x8xf32> to vector<1x4x8xf32>
    %32 = vector.shape_cast %31 : vector<1x4x8xf32> to vector<4x8xf32>
    %cst_23 = arith.constant dense<0.000000e+00> : vector<4x64xf32>
    %33 = tpu.matmul %32, %27, %cst_23 {dimension_numbers = #tpu.dot_dimension_numbers<[1], [0], [0], [1], [0, 0, 1, 1], [], []>} : vector<4x8xf32>, vector<8x64xf32>, vector<4x64xf32> -> vector<4x64xf32>
    %34 = vector.extract_strided_slice %29 {offsets = [0, 0, 0], sizes = [1, 64, 32], strides = [1, 1, 1]} : vector<3x64x32xf32> to vector<1x64x32xf32>
    %35 = vector.shape_cast %34 : vector<1x64x32xf32> to vector<64x32xf32>
    %cst_24 = arith.constant dense<0.000000e+00> : vector<4x32xf32>
    %36 = tpu.matmul %33, %35, %cst_24 {dimension_numbers = #tpu.dot_dimension_numbers<[1], [0], [0], [1], [0, 0, 1, 1], [], []>} : vector<4x64xf32>, vector<64x32xf32>, vector<4x32xf32> -> vector<4x32xf32>
    %37 = vector.extract_strided_slice %28 {offsets = [1, 0, 0], sizes = [1, 4, 8], strides = [1, 1, 1]} : vector<3x4x8xf32> to vector<1x4x8xf32>
    %38 = vector.shape_cast %37 : vector<1x4x8xf32> to vector<4x8xf32>
    %cst_25 = arith.constant dense<0.000000e+00> : vector<4x64xf32>
    %39 = tpu.matmul %38, %27, %cst_25 {dimension_numbers = #tpu.dot_dimension_numbers<[1], [0], [0], [1], [0, 0, 1, 1], [], []>} : vector<4x8xf32>, vector<8x64xf32>, vector<4x64xf32> -> vector<4x64xf32>
    %40 = vector.extract_strided_slice %29 {offsets = [1, 0, 0], sizes = [1, 64, 32], strides = [1, 1, 1]} : vector<3x64x32xf32> to vector<1x64x32xf32>
    %41 = vector.shape_cast %40 : vector<1x64x32xf32> to vector<64x32xf32>
    %cst_26 = arith.constant dense<0.000000e+00> : vector<4x32xf32>
    %42 = tpu.matmul %39, %41, %cst_26 {dimension_numbers = #tpu.dot_dimension_numbers<[1], [0], [0], [1], [0, 0, 1, 1], [], []>} : vector<4x64xf32>, vector<64x32xf32>, vector<4x32xf32> -> vector<4x32xf32>
    %43 = arith.addf %36, %42 : vector<4x32xf32>
    %44 = vector.extract_strided_slice %28 {offsets = [2, 0, 0], sizes = [1, 4, 8], strides = [1, 1, 1]} : vector<3x4x8xf32> to vector<1x4x8xf32>
    %45 = vector.shape_cast %44 : vector<1x4x8xf32> to vector<4x8xf32>
    %cst_27 = arith.constant dense<0.000000e+00> : vector<4x64xf32>
    %46 = tpu.matmul %45, %27, %cst_27 {dimension_numbers = #tpu.dot_dimension_numbers<[1], [0], [0], [1], [0, 0, 1, 1], [], []>} : vector<4x8xf32>, vector<8x64xf32>, vector<4x64xf32> -> vector<4x64xf32>
    %47 = vector.extract_strided_slice %29 {offsets = [2, 0, 0], sizes = [1, 64, 32], strides = [1, 1, 1]} : vector<3x64x32xf32> to vector<1x64x32xf32>
    %48 = vector.shape_cast %47 : vector<1x64x32xf32> to vector<64x32xf32>
    %cst_28 = arith.constant dense<0.000000e+00> : vector<4x32xf32>
    %49 = tpu.matmul %46, %48, %cst_28 {dimension_numbers = #tpu.dot_dimension_numbers<[1], [0], [0], [1], [0, 0, 1, 1], [], []>} : vector<4x64xf32>, vector<64x32xf32>, vector<4x32xf32> -> vector<4x32xf32>
    %50 = arith.addf %43, %49 : vector<4x32xf32>
    %51 = vector.broadcast %30 : vector<1x32xf32> to vector<4x32xf32>
    %52 = arith.addf %50, %51 : vector<4x32xf32>
    %cst_29 = arith.constant 0.000000e+00 : f32
    %53 = vector.broadcast %cst_29 : f32 to vector<4x32xf32>
    %54 = arith.maximumf %52, %53 : vector<4x32xf32>
    %c0_30 = arith.constant 0 : index
    %c0_31 = arith.constant 0 : index
    %c0_32 = arith.constant 0 : index
    %55 = vector.load %arg8[%c0_30, %c0_31, %c0_32] : memref<3x16x4xf32, #tpu.memory_space<vmem>>, vector<3x16x4xf32>
    %c0_33 = arith.constant 0 : index
    %c0_34 = arith.constant 0 : index
    %c0_35 = arith.constant 0 : index
    %56 = vector.load %arg9[%c0_33, %c0_34, %c0_35] : memref<3x32x128xf32, #tpu.memory_space<vmem>>, vector<3x32x128xf32>
    %c0_36 = arith.constant 0 : index
    %c0_37 = arith.constant 0 : index
    %57 = vector.load %arg10[%c0_36, %c0_37] : memref<1x128xf32, #tpu.memory_space<vmem>>, vector<1x128xf32>
    %58 = vector.extract_strided_slice %55 {offsets = [0, 0, 0], sizes = [1, 16, 4], strides = [1, 1, 1]} : vector<3x16x4xf32> to vector<1x16x4xf32>
    %59 = vector.shape_cast %58 : vector<1x16x4xf32> to vector<16x4xf32>
    %cst_38 = arith.constant dense<0.000000e+00> : vector<16x32xf32>
    %60 = tpu.matmul %59, %54, %cst_38 {dimension_numbers = #tpu.dot_dimension_numbers<[1], [0], [0], [1], [0, 0, 1, 1], [], []>} : vector<16x4xf32>, vector<4x32xf32>, vector<16x32xf32> -> vector<16x32xf32>
    %61 = vector.extract_strided_slice %56 {offsets = [0, 0, 0], sizes = [1, 32, 128], strides = [1, 1, 1]} : vector<3x32x128xf32> to vector<1x32x128xf32>
    %62 = vector.shape_cast %61 : vector<1x32x128xf32> to vector<32x128xf32>
    %cst_39 = arith.constant dense<0.000000e+00> : vector<16x128xf32>
    %63 = tpu.matmul %60, %62, %cst_39 {dimension_numbers = #tpu.dot_dimension_numbers<[1], [0], [0], [1], [0, 0, 1, 1], [], []>} : vector<16x32xf32>, vector<32x128xf32>, vector<16x128xf32> -> vector<16x128xf32>
    %64 = vector.extract_strided_slice %55 {offsets = [1, 0, 0], sizes = [1, 16, 4], strides = [1, 1, 1]} : vector<3x16x4xf32> to vector<1x16x4xf32>
    %65 = vector.shape_cast %64 : vector<1x16x4xf32> to vector<16x4xf32>
    %cst_40 = arith.constant dense<0.000000e+00> : vector<16x32xf32>
    %66 = tpu.matmul %65, %54, %cst_40 {dimension_numbers = #tpu.dot_dimension_numbers<[1], [0], [0], [1], [0, 0, 1, 1], [], []>} : vector<16x4xf32>, vector<4x32xf32>, vector<16x32xf32> -> vector<16x32xf32>
    %67 = vector.extract_strided_slice %56 {offsets = [1, 0, 0], sizes = [1, 32, 128], strides = [1, 1, 1]} : vector<3x32x128xf32> to vector<1x32x128xf32>
    %68 = vector.shape_cast %67 : vector<1x32x128xf32> to vector<32x128xf32>
    %cst_41 = arith.constant dense<0.000000e+00> : vector<16x128xf32>
    %69 = tpu.matmul %66, %68, %cst_41 {dimension_numbers = #tpu.dot_dimension_numbers<[1], [0], [0], [1], [0, 0, 1, 1], [], []>} : vector<16x32xf32>, vector<32x128xf32>, vector<16x128xf32> -> vector<16x128xf32>
    %70 = arith.addf %63, %69 : vector<16x128xf32>
    %71 = vector.extract_strided_slice %55 {offsets = [2, 0, 0], sizes = [1, 16, 4], strides = [1, 1, 1]} : vector<3x16x4xf32> to vector<1x16x4xf32>
    %72 = vector.shape_cast %71 : vector<1x16x4xf32> to vector<16x4xf32>
    %cst_42 = arith.constant dense<0.000000e+00> : vector<16x32xf32>
    %73 = tpu.matmul %72, %54, %cst_42 {dimension_numbers = #tpu.dot_dimension_numbers<[1], [0], [0], [1], [0, 0, 1, 1], [], []>} : vector<16x4xf32>, vector<4x32xf32>, vector<16x32xf32> -> vector<16x32xf32>
    %74 = vector.extract_strided_slice %56 {offsets = [2, 0, 0], sizes = [1, 32, 128], strides = [1, 1, 1]} : vector<3x32x128xf32> to vector<1x32x128xf32>
    %75 = vector.shape_cast %74 : vector<1x32x128xf32> to vector<32x128xf32>
    %cst_43 = arith.constant dense<0.000000e+00> : vector<16x128xf32>
    %76 = tpu.matmul %73, %75, %cst_43 {dimension_numbers = #tpu.dot_dimension_numbers<[1], [0], [0], [1], [0, 0, 1, 1], [], []>} : vector<16x32xf32>, vector<32x128xf32>, vector<16x128xf32> -> vector<16x128xf32>
    %77 = arith.addf %70, %76 : vector<16x128xf32>
    %78 = vector.broadcast %57 : vector<1x128xf32> to vector<16x128xf32>
    %79 = arith.addf %77, %78 : vector<16x128xf32>
    %80 = arith.negf %79 : vector<16x128xf32>
    %81 = math.exp %80 : vector<16x128xf32>
    %cst_44 = arith.constant 1.000000e+00 : f32
    %82 = vector.broadcast %cst_44 : f32 to vector<16x128xf32>
    %83 = arith.addf %82, %81 : vector<16x128xf32>
    %84 = arith.divf %82, %83 : vector<16x128xf32>
    %85 = arith.mulf %0, %84 : vector<16x128xf32>
    %c0_45 = arith.constant 0 : index
    %c0_46 = arith.constant 0 : index
    %86 = vector.load %arg11[%c0_45, %c0_46] : memref<16x128xf32, #tpu.memory_space<vmem>>, vector<16x128xf32>
    tpu.vector_store %arg11[%c0_45, %c0_46], %85 {strides = array<i32>} : memref<16x128xf32, #tpu.memory_space<vmem>>, vector<16x128xf32>,
    return
  }
  func.func @transform_0(%arg0: i32) -> (i32, i32) {
    %c0_i32 = arith.constant 0 : i32
    %c0_i32_0 = arith.constant 0 : i32
    %c0_i32_1 = arith.constant 0 : i32
    return %c0_i32, %c0_i32_0 : i32, i32
  }
  func.func @transform_1(%arg0: i32) -> (i32, i32, i32) {
    %c0_i32 = arith.constant 0 : i32
    %c0_i32_0 = arith.constant 0 : i32
    %c0_i32_1 = arith.constant 0 : i32
    %c0_i32_2 = arith.constant 0 : i32
    return %c0_i32, %c0_i32_0, %c0_i32_1 : i32, i32, i32
  }
  func.func @transform_2(%arg0: i32) -> (i32, i32, i32) {
    %c0_i32 = arith.constant 0 : i32
    %c0_i32_0 = arith.constant 0 : i32
    %c0_i32_1 = arith.constant 0 : i32
    %c0_i32_2 = arith.constant 0 : i32
    return %c0_i32, %c0_i32_0, %c0_i32_1 : i32, i32, i32
  }
  func.func @transform_3(%arg0: i32) -> (i32, i32) {
    %c0_i32 = arith.constant 0 : i32
    %c0_i32_0 = arith.constant 0 : i32
    %c0_i32_1 = arith.constant 0 : i32
    return %c0_i32, %c0_i32_0 : i32, i32
  }
  func.func @transform_4(%arg0: i32) -> (i32, i32, i32) {
    %c0_i32 = arith.constant 0 : i32
    %c0_i32_0 = arith.constant 0 : i32
    %c0_i32_1 = arith.constant 0 : i32
    %c0_i32_2 = arith.constant 0 : i32
    return %c0_i32, %c0_i32_0, %c0_i32_1 : i32, i32, i32
  }
  func.func @transform_5(%arg0: i32) -> (i32, i32, i32) {
    %c0_i32 = arith.constant 0 : i32
    %c0_i32_0 = arith.constant 0 : i32
    %c0_i32_1 = arith.constant 0 : i32
    %c0_i32_2 = arith.constant 0 : i32
    return %c0_i32, %c0_i32_0, %c0_i32_1 : i32, i32, i32
  }
  func.func @transform_6(%arg0: i32) -> (i32, i32) {
    %c0_i32 = arith.constant 0 : i32
    %c0_i32_0 = arith.constant 0 : i32
    %c0_i32_1 = arith.constant 0 : i32
    return %c0_i32, %c0_i32_0 : i32, i32
  }
  func.func @transform_7(%arg0: i32) -> (i32, i32, i32) {
    %c0_i32 = arith.constant 0 : i32
    %c0_i32_0 = arith.constant 0 : i32
    %c0_i32_1 = arith.constant 0 : i32
    %c0_i32_2 = arith.constant 0 : i32
    return %c0_i32, %c0_i32_0, %c0_i32_1 : i32, i32, i32
  }
  func.func @transform_8(%arg0: i32) -> (i32, i32, i32) {
    %c0_i32 = arith.constant 0 : i32
    %c0_i32_0 = arith.constant 0 : i32
    %c0_i32_1 = arith.constant 0 : i32
    %c0_i32_2 = arith.constant 0 : i32
    return %c0_i32, %c0_i32_0, %c0_i32_1 : i32, i32, i32
  }
  func.func @transform_9(%arg0: i32) -> (i32, i32) {
    %c0_i32 = arith.constant 0 : i32
    %c0_i32_0 = arith.constant 0 : i32
    %c0_i32_1 = arith.constant 0 : i32
    return %c0_i32, %c0_i32_0 : i32, i32
  }
  func.func @transform_10(%arg0: i32) -> (i32, i32) {
    %c0_i32 = arith.constant 0 : i32
    %c0_i32_0 = arith.constant 0 : i32
    %c0_i32_1 = arith.constant 0 : i32
    return %c0_i32, %c0_i32_0 : i32, i32
  }
}

</mosaic_0001>

<llo_original>
// kernel: tpu_custom_call.1
$region0: #{tpu_custom_call.1}
  #allocation0 [shape = 'u32[]', space=smem, size = 0x4, offset = 0x4, fixed_abs, tag = 'smem constant byte address 0x4 - core index']
  #allocation1 [shape = 'u32[144,128]{1,0:T(1,128)}', space=vmem, size = 0x12000, scoped, tag = 'internal scratch']
  %s0 = inlined_call_operand.vmem [shape: f32[16,128], index: 0, kind: input, shape index: {}]
  %s1 = inlined_call_operand.vmem [shape: f32[3,8,16], index: 1, kind: input, shape index: {}]
  %s2 = inlined_call_operand.vmem [shape: f32[3,128,64], index: 2, kind: input, shape index: {}]
  %s3 = inlined_call_operand.vmem [shape: f32[1,64], index: 3, kind: input, shape index: {}]
  %s4 = inlined_call_operand.vmem [shape: f32[3,4,8], index: 4, kind: input, shape index: {}]
  %s5 = inlined_call_operand.vmem [shape: f32[3,64,32], index: 5, kind: input, shape index: {}]
  %s6 = inlined_call_operand.vmem [shape: f32[1,32], index: 6, kind: input, shape index: {}]
  %s7 = inlined_call_operand.vmem [shape: f32[3,16,4], index: 7, kind: input, shape index: {}]
  %s8 = inlined_call_operand.vmem [shape: f32[3,32,128], index: 8, kind: input, shape index: {}]
  %s9 = inlined_call_operand.vmem [shape: f32[1,128], index: 9, kind: input, shape index: {}]
  %s10 = inlined_call_operand.hbm [shape: f32[16,128], index: 10, kind: output, shape index: {}]
  %s11 = sld [smem:[#allocation0]]
  $region50: #{tpu_custom_call.1} parent=0
    _
  %s13 = ssub.s32 1, %s11
  %s14 = scalar_select 0, %s13, %s11
  $region1: #{tpu_custom_call.1} parent=0
    #allocation2 [shape = 'u8[8192]{0}', space=vmem, size = 0x2000, scoped, tag = 'output window, operand 0, single buffered']
    #allocation3 [shape = 's32[1]{0}', space=sflag, size = 0x4, scoped, tag = 'scoped memory for tpu_custom_call.1']
    %15 = vsyncpa [#allocation3], 0
    // Predicated region
    $region2: #{tpu_custom_call.1} parent=1 // pred_check
      _
    $region3: #{tpu_custom_call.1} parent=1 // pred_check_branch
      %17 = sbr.rel (0) target = $region5
    $region4: #{tpu_custom_call.1} parent=1 // pred_region
      _
    $region5: #{tpu_custom_call.1} parent=1 // pred_fallthru
      _
    // Predicated region
    $region6: #{tpu_custom_call.1} parent=1 // pred_check
      _
    $region7: #{tpu_custom_call.1} parent=1 // pred_check_branch
      %19 = sbr.rel (0) target = $region9
    $region8: #{tpu_custom_call.1} parent=1 // pred_region
      _
    $region9: #{tpu_custom_call.1} parent=1 // pred_fallthru
      _
    // Predicated region
    $region10: #{tpu_custom_call.1} parent=1 // pred_check
      _
    $region11: #{tpu_custom_call.1} parent=1 // pred_check_branch
      %21 = sbr.rel (0) target = $region13
    $region12: #{tpu_custom_call.1} parent=1 // pred_region
      _
    $region13: #{tpu_custom_call.1} parent=1 // pred_fallthru
      _
    // Predicated region
    $region14: #{tpu_custom_call.1} parent=1 // pred_check
      _
    $region15: #{tpu_custom_call.1} parent=1 // pred_check_branch
      %23 = sbr.rel (0) target = $region17
    $region16: #{tpu_custom_call.1} parent=1 // pred_region
      _
    $region17: #{tpu_custom_call.1} parent=1 // pred_fallthru
      _
    // Predicated region
    $region18: #{tpu_custom_call.1} parent=1 // pred_check
      _
    $region19: #{tpu_custom_call.1} parent=1 // pred_check_branch
      %25 = sbr.rel (0) target = $region21
    $region20: #{tpu_custom_call.1} parent=1 // pred_region
      _
    $region21: #{tpu_custom_call.1} parent=1 // pred_fallthru
      _
    // Predicated region
    $region22: #{tpu_custom_call.1} parent=1 // pred_check
      _
    $region23: #{tpu_custom_call.1} parent=1 // pred_check_branch
      %27 = sbr.rel (0) target = $region25
    $region24: #{tpu_custom_call.1} parent=1 // pred_region
      _
    $region25: #{tpu_custom_call.1} parent=1 // pred_fallthru
      _
    // Predicated region
    $region26: #{tpu_custom_call.1} parent=1 // pred_check
      _
    $region27: #{tpu_custom_call.1} parent=1 // pred_check_branch
      %29 = sbr.rel (0) target = $region29
    $region28: #{tpu_custom_call.1} parent=1 // pred_region
      _
    $region29: #{tpu_custom_call.1} parent=1 // pred_fallthru
      _
    // Predicated region
    $region30: #{tpu_custom_call.1} parent=1 // pred_check
      _
    $region31: #{tpu_custom_call.1} parent=1 // pred_check_branch
      %31 = sbr.rel (0) target = $region33
    $region32: #{tpu_custom_call.1} parent=1 // pred_region
      _
    $region33: #{tpu_custom_call.1} parent=1 // pred_fallthru
      _
    // Predicated region
    $region34: #{tpu_custom_call.1} parent=1 // pred_check
      _
    $region35: #{tpu_custom_call.1} parent=1 // pred_check_branch
      %33 = sbr.rel (0) target = $region37
    $region36: #{tpu_custom_call.1} parent=1 // pred_region
      _
    $region37: #{tpu_custom_call.1} parent=1 // pred_fallthru
      _
    // Predicated region
    $region38: #{tpu_custom_call.1} parent=1 // pred_check
      _
    $region39: #{tpu_custom_call.1} parent=1 // pred_check_branch
      %35 = sbr.rel (0) target = $region41
    $region40: #{tpu_custom_call.1} parent=1 // pred_region
      _
    $region41: #{tpu_custom_call.1} parent=1 // pred_fallthru
      _
    %v36 = vld [vmem:[%s0] sm:$0xff]
    %v37 = vld [vmem:[%s0 + $0x8] sm:$0xff]
    %v38 = vld [vmem:[%s1] sm:$0xff]
    %v39 = vld [vmem:[%s1 + $0x8] sm:$0xff]
    %v40 = vld [vmem:[%s1 + $0x10] sm:$0xff]
    %v41 = vld [vmem:[%s2] sm:$0xff]
    %v42 = vld [vmem:[%s2 + $0x8] sm:$0xff]
    %v43 = vld [vmem:[%s2 + $0x10] sm:$0xff]
    %v44 = vld [vmem:[%s2 + $0x18] sm:$0xff]
    %v45 = vld [vmem:[%s2 + $0x20] sm:$0xff]
    %v46 = vld [vmem:[%s2 + $0x28] sm:$0xff]
    %v47 = vld [vmem:[%s2 + $0x30] sm:$0xff]
    %v48 = vld [vmem:[%s2 + $0x38] sm:$0xff]
    %v49 = vld [vmem:[%s2 + $0x40] sm:$0xff]
    %v50 = vld [vmem:[%s2 + $0x48] sm:$0xff]
    %v51 = vld [vmem:[%s2 + $0x50] sm:$0xff]
    %v52 = vld [vmem:[%s2 + $0x58] sm:$0xff]
    %v53 = vld [vmem:[%s2 + $0x60] sm:$0xff]
    %v54 = vld [vmem:[%s2 + $0x68] sm:$0xff]
    %v55 = vld [vmem:[%s2 + $0x70] sm:$0xff]
    %v56 = vld [vmem:[%s2 + $0x78] sm:$0xff]
    %v57 = vld [vmem:[%s2 + $0x80] sm:$0xff]
    %v58 = vld [vmem:[%s2 + $0x88] sm:$0xff]
    %v59 = vld [vmem:[%s2 + $0x90] sm:$0xff]
    %v60 = vld [vmem:[%s2 + $0x98] sm:$0xff]
    %v61 = vld [vmem:[%s2 + $0xa0] sm:$0xff]
    %v62 = vld [vmem:[%s2 + $0xa8] sm:$0xff]
    %v63 = vld [vmem:[%s2 + $0xb0] sm:$0xff]
    %v64 = vld [vmem:[%s2 + $0xb8] sm:$0xff]
    %v65 = vld [vmem:[%s2 + $0xc0] sm:$0xff]
    %v66 = vld [vmem:[%s2 + $0xc8] sm:$0xff]
    %v67 = vld [vmem:[%s2 + $0xd0] sm:$0xff]
    %v68 = vld [vmem:[%s2 + $0xd8] sm:$0xff]
    %v69 = vld [vmem:[%s2 + $0xe0] sm:$0xff]
    %v70 = vld [vmem:[%s2 + $0xe8] sm:$0xff]
    %v71 = vld [vmem:[%s2 + $0xf0] sm:$0xff]
    %v72 = vld [vmem:[%s2 + $0xf8] sm:$0xff]
    %v73 = vld [vmem:[%s2 + $0x100] sm:$0xff]
    %v74 = vld [vmem:[%s2 + $0x108] sm:$0xff]
    %v75 = vld [vmem:[%s2 + $0x110] sm:$0xff]
    %v76 = vld [vmem:[%s2 + $0x118] sm:$0xff]
    %v77 = vld [vmem:[%s2 + $0x120] sm:$0xff]
    %v78 = vld [vmem:[%s2 + $0x128] sm:$0xff]
    %v79 = vld [vmem:[%s2 + $0x130] sm:$0xff]
    %v80 = vld [vmem:[%s2 + $0x138] sm:$0xff]
    %v81 = vld [vmem:[%s2 + $0x140] sm:$0xff]
    %v82 = vld [vmem:[%s2 + $0x148] sm:$0xff]
    %v83 = vld [vmem:[%s2 + $0x150] sm:$0xff]
    %v84 = vld [vmem:[%s2 + $0x158] sm:$0xff]
    %v85 = vld [vmem:[%s2 + $0x160] sm:$0xff]
    %v86 = vld [vmem:[%s2 + $0x168] sm:$0xff]
    %v87 = vld [vmem:[%s2 + $0x170] sm:$0xff]
    %v88 = vld [vmem:[%s2 + $0x178] sm:$0xff]
    %v89 = vld [vmem:[%s3] sm:$0x1]
    %vm90 = vcmask 130048
    %v92 = vsel %vm90, %v38, 0
    %94 = vmatprep.subr.mxu0 0.0
    %95 = vmatpush1.msra.mxu0 0.0
    %96 = vmatprep.subr.mxu0 0.0
    %97 = vmatpush1.msra.mxu0 0.0
    %98 = vmatprep.subr.mxu0 0.0
    %99 = vmatpush1.msra.mxu0 0.0
    %100 = vmatprep.subr.mxu0 0.0
    %101 = vmatpush1.msra.mxu0 0.0
    %102 = vmatprep.subr.mxu0 0.0
    %103 = vmatpush1.msra.mxu0 0.0
    %104 = vmatprep.subr.mxu0 0.0
    %105 = vmatpush1.msra.mxu0 0.0
    %106 = vmatprep.subr.mxu0 0.0
    %107 = vmatpush1.msra.mxu0 0.0
    %108 = vmatprep.subr.mxu0 0.0
    %109 = vmatpush1.msra.mxu0 0.0
    %110 = vmatprep.subr.mxu0 0.0
    %111 = vmatpush1.msra.mxu0 0.0
    %112 = vmatprep.subr.mxu0 0.0
    %113 = vmatpush1.msra.mxu0 0.0
    %114 = vmatprep.subr.mxu0 0.0
    %115 = vmatpush1.msra.mxu0 0.0
    %116 = vmatprep.subr.mxu0 0.0
    %117 = vmatpush1.msra.mxu0 0.0
    %118 = vmatprep.subr.mxu0 0.0
    %119 = vmatpush1.msra.mxu0 0.0
    %120 = vmatprep.subr.mxu0 0.0
    %121 = vmatpush1.msra.mxu0 0.0
    %122 = vmatprep.subr.mxu0 0.0
    %123 = vmatpush1.msra.mxu0 %v37
    %124 = vmatprep.subr.mxu0 0.0
    %125 = vmatpush1.msra.mxu0 %v36
    %126 = vmatprep.subr.mxu0 0.0
    %127 = vmatpush2.msra.mxu0 0.0
    %128 = vmatprep.subr.mxu0 0.0
    %129 = vmatpush2.msra.mxu0 0.0
    %130 = vmatprep.subr.mxu0 0.0
    %131 = vmatpush2.msra.mxu0 0.0
    %132 = vmatprep.subr.mxu0 0.0
    %133 = vmatpush2.msra.mxu0 0.0
    %134 = vmatprep.subr.mxu0 0.0
    %135 = vmatpush2.msra.mxu0 0.0
    %136 = vmatprep.subr.mxu0 0.0
    %137 = vmatpush2.msra.mxu0 0.0
    %138 = vmatprep.subr.mxu0 0.0
    %139 = vmatpush2.msra.mxu0 0.0
    %140 = vmatprep.subr.mxu0 0.0
    %141 = vmatpush2.msra.mxu0 0.0
    %142 = vmatprep.subr.mxu0 0.0
    %143 = vmatpush2.msra.mxu0 0.0
    %144 = vmatprep.subr.mxu0 0.0
    %145 = vmatpush2.msra.mxu0 0.0
    %146 = vmatprep.subr.mxu0 0.0
    %147 = vmatpush2.msra.mxu0 0.0
    %148 = vmatprep.subr.mxu0 0.0
    %149 = vmatpush2.msra.mxu0 0.0
    %150 = vmatprep.subr.mxu0 0.0
    %151 = vmatpush2.msra.mxu0 0.0
    %152 = vmatprep.subr.mxu0 0.0
    %153 = vmatpush2.msra.mxu0 0.0
    %154 = vmatprep.subr.mxu0 0.0
    %155 = vmatpush2.msra.mxu0 0.0
    %156 = vmatprep.subr.mxu0 0.0
    %157 = vmatpush2.msra.mxu0 0.0
    %158 = vmatprep.mubr.f32.mxu0 0.0
    %159 = vmatmul.mubr.f32.gmra.mxu0 %v92
    %v160 = vpop.f32.mrf.mxu0
    %v161 = vadd.f32 0.0, %v160
    %v162 = vpop.f32.mrf.mxu0
    %163 = vdwg.mxu0
    %v165 = vsel %vm90, %v39, 0
    %167 = vmatprep.subr.mxu0 0.0
    %168 = vmatpush1.msra.mxu0 0.0
    %169 = vmatprep.subr.mxu0 0.0
    %170 = vmatpush1.msra.mxu0 0.0
    %171 = vmatprep.subr.mxu0 0.0
    %172 = vmatpush1.msra.mxu0 0.0
    %173 = vmatprep.subr.mxu0 0.0
    %174 = vmatpush1.msra.mxu0 0.0
    %175 = vmatprep.subr.mxu0 0.0
    %176 = vmatpush1.msra.mxu0 0.0
    %177 = vmatprep.subr.mxu0 0.0
    %178 = vmatpush1.msra.mxu0 0.0
    %179 = vmatprep.subr.mxu0 0.0
    %180 = vmatpush1.msra.mxu0 0.0
    %181 = vmatprep.subr.mxu0 0.0
    %182 = vmatpush1.msra.mxu0 0.0
    %183 = vmatprep.subr.mxu0 0.0
    %184 = vmatpush1.msra.mxu0 0.0
    %185 = vmatprep.subr.mxu0 0.0
    %186 = vmatpush1.msra.mxu0 0.0
    %187 = vmatprep.subr.mxu0 0.0
    %188 = vmatpush1.msra.mxu0 0.0
    %189 = vmatprep.subr.mxu0 0.0
    %190 = vmatpush1.msra.mxu0 0.0
    %191 = vmatprep.subr.mxu0 0.0
    %192 = vmatpush1.msra.mxu0 0.0
    %193 = vmatprep.subr.mxu0 0.0
    %194 = vmatpush1.msra.mxu0 0.0
    %195 = vmatprep.subr.mxu0 0.0
    %196 = vmatpush1.msra.mxu0 %v37
    %197 = vmatprep.subr.mxu0 0.0
    %198 = vmatpush1.msra.mxu0 %v36
    %199 = vmatprep.subr.mxu0 0.0
    %200 = vmatpush2.msra.mxu0 0.0
    %201 = vmatprep.subr.mxu0 0.0
    %202 = vmatpush2.msra.mxu0 0.0
    %203 = vmatprep.subr.mxu0 0.0
    %204 = vmatpush2.msra.mxu0 0.0
    %205 = vmatprep.subr.mxu0 0.0
    %206 = vmatpush2.msra.mxu0 0.0
    %207 = vmatprep.subr.mxu0 0.0
    %208 = vmatpush2.msra.mxu0 0.0
    %209 = vmatprep.subr.mxu0 0.0
    %210 = vmatpush2.msra.mxu0 0.0
    %211 = vmatprep.subr.mxu0 0.0
    %212 = vmatpush2.msra.mxu0 0.0
    %213 = vmatprep.subr.mxu0 0.0
    %214 = vmatpush2.msra.mxu0 0.0
    %215 = vmatprep.subr.mxu0 0.0
    %216 = vmatpush2.msra.mxu0 0.0
    %217 = vmatprep.subr.mxu0 0.0
    %218 = vmatpush2.msra.mxu0 0.0
    %219 = vmatprep.subr.mxu0 0.0
    %220 = vmatpush2.msra.mxu0 0.0
    %221 = vmatprep.subr.mxu0 0.0
    %222 = vmatpush2.msra.mxu0 0.0
    %223 = vmatprep.subr.mxu0 0.0
    %224 = vmatpush2.msra.mxu0 0.0
    %225 = vmatprep.subr.mxu0 0.0
    %226 = vmatpush2.msra.mxu0 0.0
    %227 = vmatprep.subr.mxu0 0.0
    %228 = vmatpush2.msra.mxu0 0.0
    %229 = vmatprep.subr.mxu0 0.0
    %230 = vmatpush2.msra.mxu0 0.0
    %231 = vmatprep.mubr.f32.mxu0 0.0
    %232 = vmatmul.mubr.f32.gmra.mxu0 %v165
    %v233 = vpop.f32.mrf.mxu0
    %v234 = vadd.f32 0.0, %v233
    %v235 = vpop.f32.mrf.mxu0
    %236 = vdwg.mxu0
    %237 = vmatprep.subr.mxu0 0.0
    %238 = vmatpush1.msra.mxu0 %v72
    %239 = vmatprep.subr.mxu0 0.0
    %240 = vmatpush1.msra.mxu0 %v71
    %241 = vmatprep.subr.mxu0 0.0
    %242 = vmatpush1.msra.mxu0 %v70
    %243 = vmatprep.subr.mxu0 0.0
    %244 = vmatpush1.msra.mxu0 %v69
    %245 = vmatprep.subr.mxu0 0.0
    %246 = vmatpush1.msra.mxu0 %v68
    %247 = vmatprep.subr.mxu0 0.0
    %248 = vmatpush1.msra.mxu0 %v67
    %249 = vmatprep.subr.mxu0 0.0
    %250 = vmatpush1.msra.mxu0 %v66
    %251 = vmatprep.subr.mxu0 0.0
    %252 = vmatpush1.msra.mxu0 %v65
    %253 = vmatprep.subr.mxu0 0.0
    %254 = vmatpush1.msra.mxu0 %v64
    %255 = vmatprep.subr.mxu0 0.0
    %256 = vmatpush1.msra.mxu0 %v63
    %257 = vmatprep.subr.mxu0 0.0
    %258 = vmatpush1.msra.mxu0 %v62
    %259 = vmatprep.subr.mxu0 0.0
    %260 = vmatpush1.msra.mxu0 %v61
    %261 = vmatprep.subr.mxu0 0.0
    %262 = vmatpush1.msra.mxu0 %v60
    %263 = vmatprep.subr.mxu0 0.0
    %264 = vmatpush1.msra.mxu0 %v59
    %265 = vmatprep.subr.mxu0 0.0
    %266 = vmatpush1.msra.mxu0 %v58
    %267 = vmatprep.subr.mxu0 0.0
    %268 = vmatpush1.msra.mxu0 %v57
    %269 = vmatprep.subr.mxu0 0.0
    %270 = vmatpush2.msra.mxu0 0.0
    %271 = vmatprep.subr.mxu0 0.0
    %272 = vmatpush2.msra.mxu0 0.0
    %273 = vmatprep.subr.mxu0 0.0
    %274 = vmatpush2.msra.mxu0 0.0
    %275 = vmatprep.subr.mxu0 0.0
    %276 = vmatpush2.msra.mxu0 0.0
    %277 = vmatprep.subr.mxu0 0.0
    %278 = vmatpush2.msra.mxu0 0.0
    %279 = vmatprep.subr.mxu0 0.0
    %280 = vmatpush2.msra.mxu0 0.0
    %281 = vmatprep.subr.mxu0 0.0
    %282 = vmatpush2.msra.mxu0 0.0
    %283 = vmatprep.subr.mxu0 0.0
    %284 = vmatpush2.msra.mxu0 0.0
    %285 = vmatprep.subr.mxu0 0.0
    %286 = vmatpush2.msra.mxu0 0.0
    %287 = vmatprep.subr.mxu0 0.0
    %288 = vmatpush2.msra.mxu0 0.0
    %289 = vmatprep.subr.mxu0 0.0
    %290 = vmatpush2.msra.mxu0 0.0
    %291 = vmatprep.subr.mxu0 0.0
    %292 = vmatpush2.msra.mxu0 0.0
    %293 = vmatprep.subr.mxu0 0.0
    %294 = vmatpush2.msra.mxu0 0.0
    %295 = vmatprep.subr.mxu0 0.0
    %296 = vmatpush2.msra.mxu0 0.0
    %297 = vmatprep.subr.mxu0 0.0
    %298 = vmatpush2.msra.mxu0 0.0
    %299 = vmatprep.subr.mxu0 0.0
    %300 = vmatpush2.msra.mxu0 0.0
    %301 = vmatprep.mubr.f32.mxu0 0.0
    %302 = vmatmul.mubr.f32.gmra.mxu0 %v234
    %v303 = vpop.f32.mrf.mxu0
    %v304 = vadd.f32 0.0, %v303
    %v305 = vpop.f32.mrf.mxu0
    %306 = vdwg.mxu0
    %307 = vmatprep.subr.mxu0 0.0
    %308 = vmatpush1.msra.mxu0 %v56
    %309 = vmatprep.subr.mxu0 0.0
    %310 = vmatpush1.msra.mxu0 %v55
    %311 = vmatprep.subr.mxu0 0.0
    %312 = vmatpush1.msra.mxu0 %v54
    %313 = vmatprep.subr.mxu0 0.0
    %314 = vmatpush1.msra.mxu0 %v53
    %315 = vmatprep.subr.mxu0 0.0
    %316 = vmatpush1.msra.mxu0 %v52
    %317 = vmatprep.subr.mxu0 0.0
    %318 = vmatpush1.msra.mxu0 %v51
    %319 = vmatprep.subr.mxu0 0.0
    %320 = vmatpush1.msra.mxu0 %v50
    %321 = vmatprep.subr.mxu0 0.0
    %322 = vmatpush1.msra.mxu0 %v49
    %323 = vmatprep.subr.mxu0 0.0
    %324 = vmatpush1.msra.mxu0 %v48
    %325 = vmatprep.subr.mxu0 0.0
    %326 = vmatpush1.msra.mxu0 %v47
    %327 = vmatprep.subr.mxu0 0.0
    %328 = vmatpush1.msra.mxu0 %v46
    %329 = vmatprep.subr.mxu0 0.0
    %330 = vmatpush1.msra.mxu0 %v45
    %331 = vmatprep.subr.mxu0 0.0
    %332 = vmatpush1.msra.mxu0 %v44
    %333 = vmatprep.subr.mxu0 0.0
    %334 = vmatpush1.msra.mxu0 %v43
    %335 = vmatprep.subr.mxu0 0.0
    %336 = vmatpush1.msra.mxu0 %v42
    %337 = vmatprep.subr.mxu0 0.0
    %338 = vmatpush1.msra.mxu0 %v41
    %339 = vmatprep.subr.mxu0 0.0
    %340 = vmatpush2.msra.mxu0 0.0
    %341 = vmatprep.subr.mxu0 0.0
    %342 = vmatpush2.msra.mxu0 0.0
    %343 = vmatprep.subr.mxu0 0.0
    %344 = vmatpush2.msra.mxu0 0.0
    %345 = vmatprep.subr.mxu0 0.0
    %346 = vmatpush2.msra.mxu0 0.0
    %347 = vmatprep.subr.mxu0 0.0
    %348 = vmatpush2.msra.mxu0 0.0
    %349 = vmatprep.subr.mxu0 0.0
    %350 = vmatpush2.msra.mxu0 0.0
    %351 = vmatprep.subr.mxu0 0.0
    %352 = vmatpush2.msra.mxu0 0.0
    %353 = vmatprep.subr.mxu0 0.0
    %354 = vmatpush2.msra.mxu0 0.0
    %355 = vmatprep.subr.mxu0 0.0
    %356 = vmatpush2.msra.mxu0 0.0
    %357 = vmatprep.subr.mxu0 0.0
    %358 = vmatpush2.msra.mxu0 0.0
    %359 = vmatprep.subr.mxu0 0.0
    %360 = vmatpush2.msra.mxu0 0.0
    %361 = vmatprep.subr.mxu0 0.0
    %362 = vmatpush2.msra.mxu0 0.0
    %363 = vmatprep.subr.mxu0 0.0
    %364 = vmatpush2.msra.mxu0 0.0
    %365 = vmatprep.subr.mxu0 0.0
    %366 = vmatpush2.msra.mxu0 0.0
    %367 = vmatprep.subr.mxu0 0.0
    %368 = vmatpush2.msra.mxu0 0.0
    %369 = vmatprep.subr.mxu0 0.0
    %370 = vmatpush2.msra.mxu0 0.0
    %371 = vmatprep.mubr.f32.mxu0 0.0
    %372 = vmatmul.mubr.f32.gmra.mxu0 %v161
    %v373 = vpop.f32.mrf.mxu0
    %v374 = vadd.f32 %v304, %v373
    %v375 = vpop.f32.mrf.mxu0
    %376 = vdwg.mxu0
    %v378 = vsel %vm90, %v40, 0
    %380 = vmatprep.subr.mxu0 0.0
    %381 = vmatpush1.msra.mxu0 0.0
    %382 = vmatprep.subr.mxu0 0.0
    %383 = vmatpush1.msra.mxu0 0.0
    %384 = vmatprep.subr.mxu0 0.0
    %385 = vmatpush1.msra.mxu0 0.0
    %386 = vmatprep.subr.mxu0 0.0
    %387 = vmatpush1.msra.mxu0 0.0
    %388 = vmatprep.subr.mxu0 0.0
    %389 = vmatpush1.msra.mxu0 0.0
    %390 = vmatprep.subr.mxu0 0.0
    %391 = vmatpush1.msra.mxu0 0.0
    %392 = vmatprep.subr.mxu0 0.0
    %393 = vmatpush1.msra.mxu0 0.0
    %394 = vmatprep.subr.mxu0 0.0
    %395 = vmatpush1.msra.mxu0 0.0
    %396 = vmatprep.subr.mxu0 0.0
    %397 = vmatpush1.msra.mxu0 0.0
    %398 = vmatprep.subr.mxu0 0.0
    %399 = vmatpush1.msra.mxu0 0.0
    %400 = vmatprep.subr.mxu0 0.0
    %401 = vmatpush1.msra.mxu0 0.0
    %402 = vmatprep.subr.mxu0 0.0
    %403 = vmatpush1.msra.mxu0 0.0
    %404 = vmatprep.subr.mxu0 0.0
    %405 = vmatpush1.msra.mxu0 0.0
    %406 = vmatprep.subr.mxu0 0.0
    %407 = vmatpush1.msra.mxu0 0.0
    %408 = vmatprep.subr.mxu0 0.0
    %409 = vmatpush1.msra.mxu0 %v37
    %410 = vmatprep.subr.mxu0 0.0
    %411 = vmatpush1.msra.mxu0 %v36
    %412 = vmatprep.subr.mxu0 0.0
    %413 = vmatpush2.msra.mxu0 0.0
    %414 = vmatprep.subr.mxu0 0.0
    %415 = vmatpush2.msra.mxu0 0.0
    %416 = vmatprep.subr.mxu0 0.0
    %417 = vmatpush2.msra.mxu0 0.0
    %418 = vmatprep.subr.mxu0 0.0
    %419 = vmatpush2.msra.mxu0 0.0
    %420 = vmatprep.subr.mxu0 0.0
    %421 = vmatpush2.msra.mxu0 0.0
    %422 = vmatprep.subr.mxu0 0.0
    %423 = vmatpush2.msra.mxu0 0.0
    %424 = vmatprep.subr.mxu0 0.0
    %425 = vmatpush2.msra.mxu0 0.0
    %426 = vmatprep.subr.mxu0 0.0
    %427 = vmatpush2.msra.mxu0 0.0
    %428 = vmatprep.subr.mxu0 0.0
    %429 = vmatpush2.msra.mxu0 0.0
    %430 = vmatprep.subr.mxu0 0.0
    %431 = vmatpush2.msra.mxu0 0.0
    %432 = vmatprep.subr.mxu0 0.0
    %433 = vmatpush2.msra.mxu0 0.0
    %434 = vmatprep.subr.mxu0 0.0
    %435 = vmatpush2.msra.mxu0 0.0
    %436 = vmatprep.subr.mxu0 0.0
    %437 = vmatpush2.msra.mxu0 0.0
    %438 = vmatprep.subr.mxu0 0.0
    %439 = vmatpush2.msra.mxu0 0.0
    %440 = vmatprep.subr.mxu0 0.0
    %441 = vmatpush2.msra.mxu0 0.0
    %442 = vmatprep.subr.mxu0 0.0
    %443 = vmatpush2.msra.mxu0 0.0
    %444 = vmatprep.mubr.f32.mxu0 0.0
    %445 = vmatmul.mubr.f32.gmra.mxu0 %v378
    %v446 = vpop.f32.mrf.mxu0
    %v447 = vadd.f32 0.0, %v446
    %v448 = vpop.f32.mrf.mxu0
    %449 = vdwg.mxu0
    %450 = vmatprep.subr.mxu0 0.0
    %451 = vmatpush1.msra.mxu0 %v88
    %452 = vmatprep.subr.mxu0 0.0
    %453 = vmatpush1.msra.mxu0 %v87
    %454 = vmatprep.subr.mxu0 0.0
    %455 = vmatpush1.msra.mxu0 %v86
    %456 = vmatprep.subr.mxu0 0.0
    %457 = vmatpush1.msra.mxu0 %v85
    %458 = vmatprep.subr.mxu0 0.0
    %459 = vmatpush1.msra.mxu0 %v84
    %460 = vmatprep.subr.mxu0 0.0
    %461 = vmatpush1.msra.mxu0 %v83
    %462 = vmatprep.subr.mxu0 0.0
    %463 = vmatpush1.msra.mxu0 %v82
    %464 = vmatprep.subr.mxu0 0.0
    %465 = vmatpush1.msra.mxu0 %v81
    %466 = vmatprep.subr.mxu0 0.0
    %467 = vmatpush1.msra.mxu0 %v80
    %468 = vmatprep.subr.mxu0 0.0
    %469 = vmatpush1.msra.mxu0 %v79
    %470 = vmatprep.subr.mxu0 0.0
    %471 = vmatpush1.msra.mxu0 %v78
    %472 = vmatprep.subr.mxu0 0.0
    %473 = vmatpush1.msra.mxu0 %v77
    %474 = vmatprep.subr.mxu0 0.0
    %475 = vmatpush1.msra.mxu0 %v76
    %476 = vmatprep.subr.mxu0 0.0
    %477 = vmatpush1.msra.mxu0 %v75
    %478 = vmatprep.subr.mxu0 0.0
    %479 = vmatpush1.msra.mxu0 %v74
    %480 = vmatprep.subr.mxu0 0.0
    %481 = vmatpush1.msra.mxu0 %v73
    %482 = vmatprep.subr.mxu0 0.0
    %483 = vmatpush2.msra.mxu0 0.0
    %484 = vmatprep.subr.mxu0 0.0
    %485 = vmatpush2.msra.mxu0 0.0
    %486 = vmatprep.subr.mxu0 0.0
    %487 = vmatpush2.msra.mxu0 0.0
    %488 = vmatprep.subr.mxu0 0.0
    %489 = vmatpush2.msra.mxu0 0.0
    %490 = vmatprep.subr.mxu0 0.0
    %491 = vmatpush2.msra.mxu0 0.0
    %492 = vmatprep.subr.mxu0 0.0
    %493 = vmatpush2.msra.mxu0 0.0
    %494 = vmatprep.subr.mxu0 0.0
    %495 = vmatpush2.msra.mxu0 0.0
    %496 = vmatprep.subr.mxu0 0.0
    %497 = vmatpush2.msra.mxu0 0.0
    %498 = vmatprep.subr.mxu0 0.0
    %499 = vmatpush2.msra.mxu0 0.0
    %500 = vmatprep.subr.mxu0 0.0
    %501 = vmatpush2.msra.mxu0 0.0
    %502 = vmatprep.subr.mxu0 0.0
    %503 = vmatpush2.msra.mxu0 0.0
    %504 = vmatprep.subr.mxu0 0.0
    %505 = vmatpush2.msra.mxu0 0.0
    %506 = vmatprep.subr.mxu0 0.0
    %507 = vmatpush2.msra.mxu0 0.0
    %508 = vmatprep.subr.mxu0 0.0
    %509 = vmatpush2.msra.mxu0 0.0
    %510 = vmatprep.subr.mxu0 0.0
    %511 = vmatpush2.msra.mxu0 0.0
    %512 = vmatprep.subr.mxu0 0.0
    %513 = vmatpush2.msra.mxu0 0.0
    %514 = vmatprep.mubr.f32.mxu0 0.0
    %515 = vmatmul.mubr.f32.gmra.mxu0 %v447
    %v516 = vpop.f32.mrf.mxu0
    %v517 = vadd.f32 0.0, %v516
    %v518 = vpop.f32.mrf.mxu0
    %519 = vdwg.mxu0
    %v520 = vadd.f32 %v374, %v517
    %v522 = vlaneseq
    %v523 = vshrl.u32 %v522, 7
    %v524 = vsub.s32 0, %v523
    %v525 = vrot.slane %v89, %v524
    %v527 = vadd.f32 %v520, %v525
    %v528 = vmax.f32 %v527, 0.0
    %v529 = vld [vmem:[%s4] sm:$0xf]
    %v530 = vld [vmem:[%s4 + $0x4] sm:$0xf]
    %v531 = vld [vmem:[%s4 + $0x8] sm:$0xf]
    %v532 = vld [vmem:[%s5] sm:$0xff]
    %v533 = vld [vmem:[%s5 + $0x8] sm:$0xff]
    %v534 = vld [vmem:[%s5 + $0x10] sm:$0xff]
    %v535 = vld [vmem:[%s5 + $0x18] sm:$0xff]
    %v536 = vld [vmem:[%s5 + $0x20] sm:$0xff]
    %v537 = vld [vmem:[%s5 + $0x28] sm:$0xff]
    %v538 = vld [vmem:[%s5 + $0x30] sm:$0xff]
    %v539 = vld [vmem:[%s5 + $0x38] sm:$0xff]
    %v540 = vld [vmem:[%s5 + $0x40] sm:$0xff]
    %v541 = vld [vmem:[%s5 + $0x48] sm:$0xff]
    %v542 = vld [vmem:[%s5 + $0x50] sm:$0xff]
    %v543 = vld [vmem:[%s5 + $0x58] sm:$0xff]
    %v544 = vld [vmem:[%s5 + $0x60] sm:$0xff]
    %v545 = vld [vmem:[%s5 + $0x68] sm:$0xff]
    %v546 = vld [vmem:[%s5 + $0x70] sm:$0xff]
    %v547 = vld [vmem:[%s5 + $0x78] sm:$0xff]
    %v548 = vld [vmem:[%s5 + $0x80] sm:$0xff]
    %v549 = vld [vmem:[%s5 + $0x88] sm:$0xff]
    %v550 = vld [vmem:[%s5 + $0x90] sm:$0xff]
    %v551 = vld [vmem:[%s5 + $0x98] sm:$0xff]
    %v552 = vld [vmem:[%s5 + $0xa0] sm:$0xff]
    %v553 = vld [vmem:[%s5 + $0xa8] sm:$0xff]
    %v554 = vld [vmem:[%s5 + $0xb0] sm:$0xff]
    %v555 = vld [vmem:[%s5 + $0xb8] sm:$0xff]
    %v556 = vld [vmem:[%s6] sm:$0x1]
    %vm557 = vcmask 64512
    %v559 = vsel %vm557, %v529, 0
    %561 = vmatprep.subr.mxu0 0.0
    %562 = vmatpush1.msra.mxu0 0.0
    %563 = vmatprep.subr.mxu0 0.0
    %564 = vmatpush1.msra.mxu0 0.0
    %565 = vmatprep.subr.mxu0 0.0
    %566 = vmatpush1.msra.mxu0 0.0
    %567 = vmatprep.subr.mxu0 0.0
    %568 = vmatpush1.msra.mxu0 0.0
    %569 = vmatprep.subr.mxu0 0.0
    %570 = vmatpush1.msra.mxu0 0.0
    %571 = vmatprep.subr.mxu0 0.0
    %572 = vmatpush1.msra.mxu0 0.0
    %573 = vmatprep.subr.mxu0 0.0
    %574 = vmatpush1.msra.mxu0 0.0
    %575 = vmatprep.subr.mxu0 0.0
    %576 = vmatpush1.msra.mxu0 0.0
    %577 = vmatprep.subr.mxu0 0.0
    %578 = vmatpush1.msra.mxu0 0.0
    %579 = vmatprep.subr.mxu0 0.0
    %580 = vmatpush1.msra.mxu0 0.0
    %581 = vmatprep.subr.mxu0 0.0
    %582 = vmatpush1.msra.mxu0 0.0
    %583 = vmatprep.subr.mxu0 0.0
    %584 = vmatpush1.msra.mxu0 0.0
    %585 = vmatprep.subr.mxu0 0.0
    %586 = vmatpush1.msra.mxu0 0.0
    %587 = vmatprep.subr.mxu0 0.0
    %588 = vmatpush1.msra.mxu0 0.0
    %589 = vmatprep.subr.mxu0 0.0
    %590 = vmatpush1.msra.mxu0 0.0
    %591 = vmatprep.subr.mxu0 0.0
    %592 = vmatpush1.msra.mxu0 %v528
    %593 = vmatprep.subr.mxu0 0.0
    %594 = vmatpush2.msra.mxu0 0.0
    %595 = vmatprep.subr.mxu0 0.0
    %596 = vmatpush2.msra.mxu0 0.0
    %597 = vmatprep.subr.mxu0 0.0
    %598 = vmatpush2.msra.mxu0 0.0
    %599 = vmatprep.subr.mxu0 0.0
    %600 = vmatpush2.msra.mxu0 0.0
    %601 = vmatprep.subr.mxu0 0.0
    %602 = vmatpush2.msra.mxu0 0.0
    %603 = vmatprep.subr.mxu0 0.0
    %604 = vmatpush2.msra.mxu0 0.0
    %605 = vmatprep.subr.mxu0 0.0
    %606 = vmatpush2.msra.mxu0 0.0
    %607 = vmatprep.subr.mxu0 0.0
    %608 = vmatpush2.msra.mxu0 0.0
    %609 = vmatprep.subr.mxu0 0.0
    %610 = vmatpush2.msra.mxu0 0.0
    %611 = vmatprep.subr.mxu0 0.0
    %612 = vmatpush2.msra.mxu0 0.0
    %613 = vmatprep.subr.mxu0 0.0
    %614 = vmatpush2.msra.mxu0 0.0
    %615 = vmatprep.subr.mxu0 0.0
    %616 = vmatpush2.msra.mxu0 0.0
    %617 = vmatprep.subr.mxu0 0.0
    %618 = vmatpush2.msra.mxu0 0.0
    %619 = vmatprep.subr.mxu0 0.0
    %620 = vmatpush2.msra.mxu0 0.0
    %621 = vmatprep.subr.mxu0 0.0
    %622 = vmatpush2.msra.mxu0 0.0
    %623 = vmatprep.subr.mxu0 0.0
    %624 = vmatpush2.msra.mxu0 0.0
    %625 = vmatprep.mubr.f32.mxu0 0.0
    %626 = vmatmul.mubr.f32.gmra.mxu0 %v559
    %v627 = vpop.f32.mrf.mxu0
    %v628 = vadd.f32 0.0, %v627
    %v629 = vpop.f32.mrf.mxu0
    %630 = vdwg.mxu0
    %v632 = vsel %vm557, %v530, 0
    %634 = vmatprep.subr.mxu0 0.0
    %635 = vmatpush1.msra.mxu0 0.0
    %636 = vmatprep.subr.mxu0 0.0
    %637 = vmatpush1.msra.mxu0 0.0
    %638 = vmatprep.subr.mxu0 0.0
    %639 = vmatpush1.msra.mxu0 0.0
    %640 = vmatprep.subr.mxu0 0.0
    %641 = vmatpush1.msra.mxu0 0.0
    %642 = vmatprep.subr.mxu0 0.0
    %643 = vmatpush1.msra.mxu0 0.0
    %644 = vmatprep.subr.mxu0 0.0
    %645 = vmatpush1.msra.mxu0 0.0
    %646 = vmatprep.subr.mxu0 0.0
    %647 = vmatpush1.msra.mxu0 0.0
    %648 = vmatprep.subr.mxu0 0.0
    %649 = vmatpush1.msra.mxu0 0.0
    %650 = vmatprep.subr.mxu0 0.0
    %651 = vmatpush1.msra.mxu0 0.0
    %652 = vmatprep.subr.mxu0 0.0
    %653 = vmatpush1.msra.mxu0 0.0
    %654 = vmatprep.subr.mxu0 0.0
    %655 = vmatpush1.msra.mxu0 0.0
    %656 = vmatprep.subr.mxu0 0.0
    %657 = vmatpush1.msra.mxu0 0.0
    %658 = vmatprep.subr.mxu0 0.0
    %659 = vmatpush1.msra.mxu0 0.0
    %660 = vmatprep.subr.mxu0 0.0
    %661 = vmatpush1.msra.mxu0 0.0
    %662 = vmatprep.subr.mxu0 0.0
    %663 = vmatpush1.msra.mxu0 0.0
    %664 = vmatprep.subr.mxu0 0.0
    %665 = vmatpush1.msra.mxu0 %v528
    %666 = vmatprep.subr.mxu0 0.0
    %667 = vmatpush2.msra.mxu0 0.0
    %668 = vmatprep.subr.mxu0 0.0
    %669 = vmatpush2.msra.mxu0 0.0
    %670 = vmatprep.subr.mxu0 0.0
    %671 = vmatpush2.msra.mxu0 0.0
    %672 = vmatprep.subr.mxu0 0.0
    %673 = vmatpush2.msra.mxu0 0.0
    %674 = vmatprep.subr.mxu0 0.0
    %675 = vmatpush2.msra.mxu0 0.0
    %676 = vmatprep.subr.mxu0 0.0
    %677 = vmatpush2.msra.mxu0 0.0
    %678 = vmatprep.subr.mxu0 0.0
    %679 = vmatpush2.msra.mxu0 0.0
    %680 = vmatprep.subr.mxu0 0.0
    %681 = vmatpush2.msra.mxu0 0.0
    %682 = vmatprep.subr.mxu0 0.0
    %683 = vmatpush2.msra.mxu0 0.0
    %684 = vmatprep.subr.mxu0 0.0
    %685 = vmatpush2.msra.mxu0 0.0
    %686 = vmatprep.subr.mxu0 0.0
    %687 = vmatpush2.msra.mxu0 0.0
    %688 = vmatprep.subr.mxu0 0.0
    %689 = vmatpush2.msra.mxu0 0.0
    %690 = vmatprep.subr.mxu0 0.0
    %691 = vmatpush2.msra.mxu0 0.0
    %692 = vmatprep.subr.mxu0 0.0
    %693 = vmatpush2.msra.mxu0 0.0
    %694 = vmatprep.subr.mxu0 0.0
    %695 = vmatpush2.msra.mxu0 0.0
    %696 = vmatprep.subr.mxu0 0.0
    %697 = vmatpush2.msra.mxu0 0.0
    %698 = vmatprep.mubr.f32.mxu0 0.0
    %699 = vmatmul.mubr.f32.gmra.mxu0 %v632
    %v700 = vpop.f32.mrf.mxu0
    %v701 = vadd.f32 0.0, %v700
    %v702 = vpop.f32.mrf.mxu0
    %703 = vdwg.mxu0
    %vm704 = vcmask 523264
    %v706 = vsel %vm704, %v701, 0
    %708 = vmatprep.subr.mxu0 0.0
    %709 = vmatpush1.msra.mxu0 0.0
    %710 = vmatprep.subr.mxu0 0.0
    %711 = vmatpush1.msra.mxu0 0.0
    %712 = vmatprep.subr.mxu0 0.0
    %713 = vmatpush1.msra.mxu0 0.0
    %714 = vmatprep.subr.mxu0 0.0
    %715 = vmatpush1.msra.mxu0 0.0
    %716 = vmatprep.subr.mxu0 0.0
    %717 = vmatpush1.msra.mxu0 0.0
    %718 = vmatprep.subr.mxu0 0.0
    %719 = vmatpush1.msra.mxu0 0.0
    %720 = vmatprep.subr.mxu0 0.0
    %721 = vmatpush1.msra.mxu0 0.0
    %722 = vmatprep.subr.mxu0 0.0
    %723 = vmatpush1.msra.mxu0 0.0
    %724 = vmatprep.subr.mxu0 0.0
    %725 = vmatpush1.msra.mxu0 %v547
    %726 = vmatprep.subr.mxu0 0.0
    %727 = vmatpush1.msra.mxu0 %v546
    %728 = vmatprep.subr.mxu0 0.0
    %729 = vmatpush1.msra.mxu0 %v545
    %730 = vmatprep.subr.mxu0 0.0
    %731 = vmatpush1.msra.mxu0 %v544
    %732 = vmatprep.subr.mxu0 0.0
    %733 = vmatpush1.msra.mxu0 %v543
    %734 = vmatprep.subr.mxu0 0.0
    %735 = vmatpush1.msra.mxu0 %v542
    %736 = vmatprep.subr.mxu0 0.0
    %737 = vmatpush1.msra.mxu0 %v541
    %738 = vmatprep.subr.mxu0 0.0
    %739 = vmatpush1.msra.mxu0 %v540
    %740 = vmatprep.subr.mxu0 0.0
    %741 = vmatpush2.msra.mxu0 0.0
    %742 = vmatprep.subr.mxu0 0.0
    %743 = vmatpush2.msra.mxu0 0.0
    %744 = vmatprep.subr.mxu0 0.0
    %745 = vmatpush2.msra.mxu0 0.0
    %746 = vmatprep.subr.mxu0 0.0
    %747 = vmatpush2.msra.mxu0 0.0
    %748 = vmatprep.subr.mxu0 0.0
    %749 = vmatpush2.msra.mxu0 0.0
    %750 = vmatprep.subr.mxu0 0.0
    %751 = vmatpush2.msra.mxu0 0.0
    %752 = vmatprep.subr.mxu0 0.0
    %753 = vmatpush2.msra.mxu0 0.0
    %754 = vmatprep.subr.mxu0 0.0
    %755 = vmatpush2.msra.mxu0 0.0
    %756 = vmatprep.subr.mxu0 0.0
    %757 = vmatpush2.msra.mxu0 0.0
    %758 = vmatprep.subr.mxu0 0.0
    %759 = vmatpush2.msra.mxu0 0.0
    %760 = vmatprep.subr.mxu0 0.0
    %761 = vmatpush2.msra.mxu0 0.0
    %762 = vmatprep.subr.mxu0 0.0
    %763 = vmatpush2.msra.mxu0 0.0
    %764 = vmatprep.subr.mxu0 0.0
    %765 = vmatpush2.msra.mxu0 0.0
    %766 = vmatprep.subr.mxu0 0.0
    %767 = vmatpush2.msra.mxu0 0.0
    %768 = vmatprep.subr.mxu0 0.0
    %769 = vmatpush2.msra.mxu0 0.0
    %770 = vmatprep.subr.mxu0 0.0
    %771 = vmatpush2.msra.mxu0 0.0
    %772 = vmatprep.mubr.f32.mxu0 0.0
    %773 = vmatmul.mubr.f32.gmra.mxu0 %v706
    %v774 = vpop.f32.mrf.mxu0
    %v775 = vadd.f32 0.0, %v774
    %v776 = vpop.f32.mrf.mxu0
    %777 = vdwg.mxu0
    %v779 = vsel %vm704, %v628, 0
    %781 = vmatprep.subr.mxu0 0.0
    %782 = vmatpush1.msra.mxu0 0.0
    %783 = vmatprep.subr.mxu0 0.0
    %784 = vmatpush1.msra.mxu0 0.0
    %785 = vmatprep.subr.mxu0 0.0
    %786 = vmatpush1.msra.mxu0 0.0
    %787 = vmatprep.subr.mxu0 0.0
    %788 = vmatpush1.msra.mxu0 0.0
    %789 = vmatprep.subr.mxu0 0.0
    %790 = vmatpush1.msra.mxu0 0.0
    %791 = vmatprep.subr.mxu0 0.0
    %792 = vmatpush1.msra.mxu0 0.0
    %793 = vmatprep.subr.mxu0 0.0
    %794 = vmatpush1.msra.mxu0 0.0
    %795 = vmatprep.subr.mxu0 0.0
    %796 = vmatpush1.msra.mxu0 0.0
    %797 = vmatprep.subr.mxu0 0.0
    %798 = vmatpush1.msra.mxu0 %v539
    %799 = vmatprep.subr.mxu0 0.0
    %800 = vmatpush1.msra.mxu0 %v538
    %801 = vmatprep.subr.mxu0 0.0
    %802 = vmatpush1.msra.mxu0 %v537
    %803 = vmatprep.subr.mxu0 0.0
    %804 = vmatpush1.msra.mxu0 %v536
    %805 = vmatprep.subr.mxu0 0.0
    %806 = vmatpush1.msra.mxu0 %v535
    %807 = vmatprep.subr.mxu0 0.0
    %808 = vmatpush1.msra.mxu0 %v534
    %809 = vmatprep.subr.mxu0 0.0
    %810 = vmatpush1.msra.mxu0 %v533
    %811 = vmatprep.subr.mxu0 0.0
    %812 = vmatpush1.msra.mxu0 %v532
    %813 = vmatprep.subr.mxu0 0.0
    %814 = vmatpush2.msra.mxu0 0.0
    %815 = vmatprep.subr.mxu0 0.0
    %816 = vmatpush2.msra.mxu0 0.0
    %817 = vmatprep.subr.mxu0 0.0
    %818 = vmatpush2.msra.mxu0 0.0
    %819 = vmatprep.subr.mxu0 0.0
    %820 = vmatpush2.msra.mxu0 0.0
    %821 = vmatprep.subr.mxu0 0.0
    %822 = vmatpush2.msra.mxu0 0.0
    %823 = vmatprep.subr.mxu0 0.0
    %824 = vmatpush2.msra.mxu0 0.0
    %825 = vmatprep.subr.mxu0 0.0
    %826 = vmatpush2.msra.mxu0 0.0
    %827 = vmatprep.subr.mxu0 0.0
    %828 = vmatpush2.msra.mxu0 0.0
    %829 = vmatprep.subr.mxu0 0.0
    %830 = vmatpush2.msra.mxu0 0.0
    %831 = vmatprep.subr.mxu0 0.0
    %832 = vmatpush2.msra.mxu0 0.0
    %833 = vmatprep.subr.mxu0 0.0
    %834 = vmatpush2.msra.mxu0 0.0
    %835 = vmatprep.subr.mxu0 0.0
    %836 = vmatpush2.msra.mxu0 0.0
    %837 = vmatprep.subr.mxu0 0.0
    %838 = vmatpush2.msra.mxu0 0.0
    %839 = vmatprep.subr.mxu0 0.0
    %840 = vmatpush2.msra.mxu0 0.0
    %841 = vmatprep.subr.mxu0 0.0
    %842 = vmatpush2.msra.mxu0 0.0
    %843 = vmatprep.subr.mxu0 0.0
    %844 = vmatpush2.msra.mxu0 0.0
    %845 = vmatprep.mubr.f32.mxu0 0.0
    %846 = vmatmul.mubr.f32.gmra.mxu0 %v779
    %v847 = vpop.f32.mrf.mxu0
    %v848 = vadd.f32 %v775, %v847
    %v849 = vpop.f32.mrf.mxu0
    %850 = vdwg.mxu0
    %v852 = vsel %vm557, %v531, 0
    %854 = vmatprep.subr.mxu0 0.0
    %855 = vmatpush1.msra.mxu0 0.0
    %856 = vmatprep.subr.mxu0 0.0
    %857 = vmatpush1.msra.mxu0 0.0
    %858 = vmatprep.subr.mxu0 0.0
    %859 = vmatpush1.msra.mxu0 0.0
    %860 = vmatprep.subr.mxu0 0.0
    %861 = vmatpush1.msra.mxu0 0.0
    %862 = vmatprep.subr.mxu0 0.0
    %863 = vmatpush1.msra.mxu0 0.0
    %864 = vmatprep.subr.mxu0 0.0
    %865 = vmatpush1.msra.mxu0 0.0
    %866 = vmatprep.subr.mxu0 0.0
    %867 = vmatpush1.msra.mxu0 0.0
    %868 = vmatprep.subr.mxu0 0.0
    %869 = vmatpush1.msra.mxu0 0.0
    %870 = vmatprep.subr.mxu0 0.0
    %871 = vmatpush1.msra.mxu0 0.0
    %872 = vmatprep.subr.mxu0 0.0
    %873 = vmatpush1.msra.mxu0 0.0
    %874 = vmatprep.subr.mxu0 0.0
    %875 = vmatpush1.msra.mxu0 0.0
    %876 = vmatprep.subr.mxu0 0.0
    %877 = vmatpush1.msra.mxu0 0.0
    %878 = vmatprep.subr.mxu0 0.0
    %879 = vmatpush1.msra.mxu0 0.0
    %880 = vmatprep.subr.mxu0 0.0
    %881 = vmatpush1.msra.mxu0 0.0
    %882 = vmatprep.subr.mxu0 0.0
    %883 = vmatpush1.msra.mxu0 0.0
    %884 = vmatprep.subr.mxu0 0.0
    %885 = vmatpush1.msra.mxu0 %v528
    %886 = vmatprep.subr.mxu0 0.0
    %887 = vmatpush2.msra.mxu0 0.0
    %888 = vmatprep.subr.mxu0 0.0
    %889 = vmatpush2.msra.mxu0 0.0
    %890 = vmatprep.subr.mxu0 0.0
    %891 = vmatpush2.msra.mxu0 0.0
    %892 = vmatprep.subr.mxu0 0.0
    %893 = vmatpush2.msra.mxu0 0.0
    %894 = vmatprep.subr.mxu0 0.0
    %895 = vmatpush2.msra.mxu0 0.0
    %896 = vmatprep.subr.mxu0 0.0
    %897 = vmatpush2.msra.mxu0 0.0
    %898 = vmatprep.subr.mxu0 0.0
    %899 = vmatpush2.msra.mxu0 0.0
    %900 = vmatprep.subr.mxu0 0.0
    %901 = vmatpush2.msra.mxu0 0.0
    %902 = vmatprep.subr.mxu0 0.0
    %903 = vmatpush2.msra.mxu0 0.0
    %904 = vmatprep.subr.mxu0 0.0
    %905 = vmatpush2.msra.mxu0 0.0
    %906 = vmatprep.subr.mxu0 0.0
    %907 = vmatpush2.msra.mxu0 0.0
    %908 = vmatprep.subr.mxu0 0.0
    %909 = vmatpush2.msra.mxu0 0.0
    %910 = vmatprep.subr.mxu0 0.0
    %911 = vmatpush2.msra.mxu0 0.0
    %912 = vmatprep.subr.mxu0 0.0
    %913 = vmatpush2.msra.mxu0 0.0
    %914 = vmatprep.subr.mxu0 0.0
    %915 = vmatpush2.msra.mxu0 0.0
    %916 = vmatprep.subr.mxu0 0.0
    %917 = vmatpush2.msra.mxu0 0.0
    %918 = vmatprep.mubr.f32.mxu0 0.0
    %919 = vmatmul.mubr.f32.gmra.mxu0 %v852
    %v920 = vpop.f32.mrf.mxu0
    %v921 = vadd.f32 0.0, %v920
    %v922 = vpop.f32.mrf.mxu0
    %923 = vdwg.mxu0
    %v925 = vsel %vm704, %v921, 0
    %927 = vmatprep.subr.mxu0 0.0
    %928 = vmatpush1.msra.mxu0 0.0
    %929 = vmatprep.subr.mxu0 0.0
    %930 = vmatpush1.msra.mxu0 0.0
    %931 = vmatprep.subr.mxu0 0.0
    %932 = vmatpush1.msra.mxu0 0.0
    %933 = vmatprep.subr.mxu0 0.0
    %934 = vmatpush1.msra.mxu0 0.0
    %935 = vmatprep.subr.mxu0 0.0
    %936 = vmatpush1.msra.mxu0 0.0
    %937 = vmatprep.subr.mxu0 0.0
    %938 = vmatpush1.msra.mxu0 0.0
    %939 = vmatprep.subr.mxu0 0.0
    %940 = vmatpush1.msra.mxu0 0.0
    %941 = vmatprep.subr.mxu0 0.0
    %942 = vmatpush1.msra.mxu0 0.0
    %943 = vmatprep.subr.mxu0 0.0
    %944 = vmatpush1.msra.mxu0 %v555
    %945 = vmatprep.subr.mxu0 0.0
    %946 = vmatpush1.msra.mxu0 %v554
    %947 = vmatprep.subr.mxu0 0.0
    %948 = vmatpush1.msra.mxu0 %v553
    %949 = vmatprep.subr.mxu0 0.0
    %950 = vmatpush1.msra.mxu0 %v552
    %951 = vmatprep.subr.mxu0 0.0
    %952 = vmatpush1.msra.mxu0 %v551
    %953 = vmatprep.subr.mxu0 0.0
    %954 = vmatpush1.msra.mxu0 %v550
    %955 = vmatprep.subr.mxu0 0.0
    %956 = vmatpush1.msra.mxu0 %v549
    %957 = vmatprep.subr.mxu0 0.0
    %958 = vmatpush1.msra.mxu0 %v548
    %959 = vmatprep.subr.mxu0 0.0
    %960 = vmatpush2.msra.mxu0 0.0
    %961 = vmatprep.subr.mxu0 0.0
    %962 = vmatpush2.msra.mxu0 0.0
    %963 = vmatprep.subr.mxu0 0.0
    %964 = vmatpush2.msra.mxu0 0.0
    %965 = vmatprep.subr.mxu0 0.0
    %966 = vmatpush2.msra.mxu0 0.0
    %967 = vmatprep.subr.mxu0 0.0
    %968 = vmatpush2.msra.mxu0 0.0
    %969 = vmatprep.subr.mxu0 0.0
    %970 = vmatpush2.msra.mxu0 0.0
    %971 = vmatprep.subr.mxu0 0.0
    %972 = vmatpush2.msra.mxu0 0.0
    %973 = vmatprep.subr.mxu0 0.0
    %974 = vmatpush2.msra.mxu0 0.0
    %975 = vmatprep.subr.mxu0 0.0
    %976 = vmatpush2.msra.mxu0 0.0
    %977 = vmatprep.subr.mxu0 0.0
    %978 = vmatpush2.msra.mxu0 0.0
    %979 = vmatprep.subr.mxu0 0.0
    %980 = vmatpush2.msra.mxu0 0.0
    %981 = vmatprep.subr.mxu0 0.0
    %982 = vmatpush2.msra.mxu0 0.0
    %983 = vmatprep.subr.mxu0 0.0
    %984 = vmatpush2.msra.mxu0 0.0
    %985 = vmatprep.subr.mxu0 0.0
    %986 = vmatpush2.msra.mxu0 0.0
    %987 = vmatprep.subr.mxu0 0.0
    %988 = vmatpush2.msra.mxu0 0.0
    %989 = vmatprep.subr.mxu0 0.0
    %990 = vmatpush2.msra.mxu0 0.0
    %991 = vmatprep.mubr.f32.mxu0 0.0
    %992 = vmatmul.mubr.f32.gmra.mxu0 %v925
    %v993 = vpop.f32.mrf.mxu0
    %v994 = vadd.f32 0.0, %v993
    %v995 = vpop.f32.mrf.mxu0
    %996 = vdwg.mxu0
    %v997 = vadd.f32 %v848, %v994
    %v999 = vlaneseq
    %v1000 = vshrl.u32 %v999, 7
    %v1001 = vsub.s32 0, %v1000
    %v1002 = vrot.slane %v556, %v1001
    %v1004 = vadd.f32 %v997, %v1002
    %v1005 = vmax.f32 %v1004, 0.0
    %v1006 = vld [vmem:[%s7] sm:$0xff]
    %v1007 = vld [vmem:[%s7 + $0x8] sm:$0xff]
    %v1008 = vld [vmem:[%s7 + $0x10] sm:$0xff]
    %v1009 = vld [vmem:[%s7 + $0x18] sm:$0xff]
    %v1010 = vld [vmem:[%s7 + $0x20] sm:$0xff]
    %v1011 = vld [vmem:[%s7 + $0x28] sm:$0xff]
    %v1012 = vld [vmem:[%s8] sm:$0xff]
    %v1013 = vld [vmem:[%s8 + $0x8] sm:$0xff]
    %v1014 = vld [vmem:[%s8 + $0x10] sm:$0xff]
    %v1015 = vld [vmem:[%s8 + $0x18] sm:$0xff]
    %v1016 = vld [vmem:[%s8 + $0x20] sm:$0xff]
    %v1017 = vld [vmem:[%s8 + $0x28] sm:$0xff]
    %v1018 = vld [vmem:[%s8 + $0x30] sm:$0xff]
    %v1019 = vld [vmem:[%s8 + $0x38] sm:$0xff]
    %v1020 = vld [vmem:[%s8 + $0x40] sm:$0xff]
    %v1021 = vld [vmem:[%s8 + $0x48] sm:$0xff]
    %v1022 = vld [vmem:[%s8 + $0x50] sm:$0xff]
    %v1023 = vld [vmem:[%s8 + $0x58] sm:$0xff]
    %v1024 = vld [vmem:[%s9] sm:$0x1]
    %vm1025 = vcmask 31744
    %v1027 = vsel %vm1025, %v1006, 0
    %v1030 = vsel %vm1025, %v1007, 0
    %vm1032 = vcmask 1043456
    %v1034 = vsel %vm1032, %v1005, 0
    %1036 = vmatprep.subr.mxu0 0.0
    %1037 = vmatpush1.msra.mxu0 0.0
    %1038 = vmatprep.subr.mxu0 0.0
    %1039 = vmatpush1.msra.mxu0 0.0
    %1040 = vmatprep.subr.mxu0 0.0
    %1041 = vmatpush1.msra.mxu0 0.0
    %1042 = vmatprep.subr.mxu0 0.0
    %1043 = vmatpush1.msra.mxu0 0.0
    %1044 = vmatprep.subr.mxu0 0.0
    %1045 = vmatpush1.msra.mxu0 0.0
    %1046 = vmatprep.subr.mxu0 0.0
    %1047 = vmatpush1.msra.mxu0 0.0
    %1048 = vmatprep.subr.mxu0 0.0
    %1049 = vmatpush1.msra.mxu0 0.0
    %1050 = vmatprep.subr.mxu0 0.0
    %1051 = vmatpush1.msra.mxu0 0.0
    %1052 = vmatprep.subr.mxu0 0.0
    %1053 = vmatpush1.msra.mxu0 0.0
    %1054 = vmatprep.subr.mxu0 0.0
    %1055 = vmatpush1.msra.mxu0 0.0
    %1056 = vmatprep.subr.mxu0 0.0
    %1057 = vmatpush1.msra.mxu0 0.0
    %1058 = vmatprep.subr.mxu0 0.0
    %1059 = vmatpush1.msra.mxu0 0.0
    %1060 = vmatprep.subr.mxu0 0.0
    %1061 = vmatpush1.msra.mxu0 0.0
    %1062 = vmatprep.subr.mxu0 0.0
    %1063 = vmatpush1.msra.mxu0 0.0
    %1064 = vmatprep.subr.mxu0 0.0
    %1065 = vmatpush1.msra.mxu0 0.0
    %1066 = vmatprep.subr.mxu0 0.0
    %1067 = vmatpush1.msra.mxu0 %v1034
    %1068 = vmatprep.subr.mxu0 0.0
    %1069 = vmatpush2.msra.mxu0 0.0
    %1070 = vmatprep.subr.mxu0 0.0
    %1071 = vmatpush2.msra.mxu0 0.0
    %1072 = vmatprep.subr.mxu0 0.0
    %1073 = vmatpush2.msra.mxu0 0.0
    %1074 = vmatprep.subr.mxu0 0.0
    %1075 = vmatpush2.msra.mxu0 0.0
    %1076 = vmatprep.subr.mxu0 0.0
    %1077 = vmatpush2.msra.mxu0 0.0
    %1078 = vmatprep.subr.mxu0 0.0
    %1079 = vmatpush2.msra.mxu0 0.0
    %1080 = vmatprep.subr.mxu0 0.0
    %1081 = vmatpush2.msra.mxu0 0.0
    %1082 = vmatprep.subr.mxu0 0.0
    %1083 = vmatpush2.msra.mxu0 0.0
    %1084 = vmatprep.subr.mxu0 0.0
    %1085 = vmatpush2.msra.mxu0 0.0
    %1086 = vmatprep.subr.mxu0 0.0
    %1087 = vmatpush2.msra.mxu0 0.0
    %1088 = vmatprep.subr.mxu0 0.0
    %1089 = vmatpush2.msra.mxu0 0.0
    %1090 = vmatprep.subr.mxu0 0.0
    %1091 = vmatpush2.msra.mxu0 0.0
    %1092 = vmatprep.subr.mxu0 0.0
    %1093 = vmatpush2.msra.mxu0 0.0
    %1094 = vmatprep.subr.mxu0 0.0
    %1095 = vmatpush2.msra.mxu0 0.0
    %1096 = vmatprep.subr.mxu0 0.0
    %1097 = vmatpush2.msra.mxu0 0.0
    %1098 = vmatprep.subr.mxu0 0.0
    %1099 = vmatpush2.msra.mxu0 0.0
    %1100 = vmatprep.mubr.f32.mxu0 0.0
    %1101 = vmatmul.mubr.f32.gmra.mxu0 %v1027
    %v1102 = vpop.f32.mrf.mxu0
    %v1103 = vadd.f32 0.0, %v1102
    %v1104 = vpop.f32.mrf.mxu0
    %1105 = vmatprep.mubr.f32.mxu0 0.0
    %1106 = vmatmul.mubr.f32.gmra.mxu0 %v1030
    %v1107 = vpop.f32.mrf.mxu0
    %v1108 = vadd.f32 0.0, %v1107
    %v1109 = vpop.f32.mrf.mxu0
    %1110 = vdwg.mxu0
    %v1112 = vsel %vm1025, %v1008, 0
    %v1115 = vsel %vm1025, %v1009, 0
    %1117 = vmatprep.subr.mxu0 0.0
    %1118 = vmatpush1.msra.mxu0 0.0
    %1119 = vmatprep.subr.mxu0 0.0
    %1120 = vmatpush1.msra.mxu0 0.0
    %1121 = vmatprep.subr.mxu0 0.0
    %1122 = vmatpush1.msra.mxu0 0.0
    %1123 = vmatprep.subr.mxu0 0.0
    %1124 = vmatpush1.msra.mxu0 0.0
    %1125 = vmatprep.subr.mxu0 0.0
    %1126 = vmatpush1.msra.mxu0 0.0
    %1127 = vmatprep.subr.mxu0 0.0
    %1128 = vmatpush1.msra.mxu0 0.0
    %1129 = vmatprep.subr.mxu0 0.0
    %1130 = vmatpush1.msra.mxu0 0.0
    %1131 = vmatprep.subr.mxu0 0.0
    %1132 = vmatpush1.msra.mxu0 0.0
    %1133 = vmatprep.subr.mxu0 0.0
    %1134 = vmatpush1.msra.mxu0 0.0
    %1135 = vmatprep.subr.mxu0 0.0
    %1136 = vmatpush1.msra.mxu0 0.0
    %1137 = vmatprep.subr.mxu0 0.0
    %1138 = vmatpush1.msra.mxu0 0.0
    %1139 = vmatprep.subr.mxu0 0.0
    %1140 = vmatpush1.msra.mxu0 0.0
    %1141 = vmatprep.subr.mxu0 0.0
    %1142 = vmatpush1.msra.mxu0 0.0
    %1143 = vmatprep.subr.mxu0 0.0
    %1144 = vmatpush1.msra.mxu0 0.0
    %1145 = vmatprep.subr.mxu0 0.0
    %1146 = vmatpush1.msra.mxu0 0.0
    %1147 = vmatprep.subr.mxu0 0.0
    %1148 = vmatpush1.msra.mxu0 %v1034
    %1149 = vmatprep.subr.mxu0 0.0
    %1150 = vmatpush2.msra.mxu0 0.0
    %1151 = vmatprep.subr.mxu0 0.0
    %1152 = vmatpush2.msra.mxu0 0.0
    %1153 = vmatprep.subr.mxu0 0.0
    %1154 = vmatpush2.msra.mxu0 0.0
    %1155 = vmatprep.subr.mxu0 0.0
    %1156 = vmatpush2.msra.mxu0 0.0
    %1157 = vmatprep.subr.mxu0 0.0
    %1158 = vmatpush2.msra.mxu0 0.0
    %1159 = vmatprep.subr.mxu0 0.0
    %1160 = vmatpush2.msra.mxu0 0.0
    %1161 = vmatprep.subr.mxu0 0.0
    %1162 = vmatpush2.msra.mxu0 0.0
    %1163 = vmatprep.subr.mxu0 0.0
    %1164 = vmatpush2.msra.mxu0 0.0
    %1165 = vmatprep.subr.mxu0 0.0
    %1166 = vmatpush2.msra.mxu0 0.0
    %1167 = vmatprep.subr.mxu0 0.0
    %1168 = vmatpush2.msra.mxu0 0.0
    %1169 = vmatprep.subr.mxu0 0.0
    %1170 = vmatpush2.msra.mxu0 0.0
    %1171 = vmatprep.subr.mxu0 0.0
    %1172 = vmatpush2.msra.mxu0 0.0
    %1173 = vmatprep.subr.mxu0 0.0
    %1174 = vmatpush2.msra.mxu0 0.0
    %1175 = vmatprep.subr.mxu0 0.0
    %1176 = vmatpush2.msra.mxu0 0.0
    %1177 = vmatprep.subr.mxu0 0.0
    %1178 = vmatpush2.msra.mxu0 0.0
    %1179 = vmatprep.subr.mxu0 0.0
    %1180 = vmatpush2.msra.mxu0 0.0
    %1181 = vmatprep.mubr.f32.mxu0 0.0
    %1182 = vmatmul.mubr.f32.gmra.mxu0 %v1112
    %v1183 = vpop.f32.mrf.mxu0
    %v1184 = vadd.f32 0.0, %v1183
    %v1185 = vpop.f32.mrf.mxu0
    %1186 = vmatprep.mubr.f32.mxu0 0.0
    %1187 = vmatmul.mubr.f32.gmra.mxu0 %v1115
    %v1188 = vpop.f32.mrf.mxu0
    %v1189 = vadd.f32 0.0, %v1188
    %v1190 = vpop.f32.mrf.mxu0
    %1191 = vdwg.mxu0
    %vm1192 = vcmask 261120
    %v1194 = vsel %vm1192, %v1184, 0
    %v1197 = vsel %vm1192, %v1189, 0
    %1199 = vmatprep.subr.mxu0 0.0
    %1200 = vmatpush1.msra.mxu0 0.0
    %1201 = vmatprep.subr.mxu0 0.0
    %1202 = vmatpush1.msra.mxu0 0.0
    %1203 = vmatprep.subr.mxu0 0.0
    %1204 = vmatpush1.msra.mxu0 0.0
    %1205 = vmatprep.subr.mxu0 0.0
    %1206 = vmatpush1.msra.mxu0 0.0
    %1207 = vmatprep.subr.mxu0 0.0
    %1208 = vmatpush1.msra.mxu0 0.0
    %1209 = vmatprep.subr.mxu0 0.0
    %1210 = vmatpush1.msra.mxu0 0.0
    %1211 = vmatprep.subr.mxu0 0.0
    %1212 = vmatpush1.msra.mxu0 0.0
    %1213 = vmatprep.subr.mxu0 0.0
    %1214 = vmatpush1.msra.mxu0 0.0
    %1215 = vmatprep.subr.mxu0 0.0
    %1216 = vmatpush1.msra.mxu0 0.0
    %1217 = vmatprep.subr.mxu0 0.0
    %1218 = vmatpush1.msra.mxu0 0.0
    %1219 = vmatprep.subr.mxu0 0.0
    %1220 = vmatpush1.msra.mxu0 0.0
    %1221 = vmatprep.subr.mxu0 0.0
    %1222 = vmatpush1.msra.mxu0 0.0
    %1223 = vmatprep.subr.mxu0 0.0
    %1224 = vmatpush1.msra.mxu0 %v1019
    %1225 = vmatprep.subr.mxu0 0.0
    %1226 = vmatpush1.msra.mxu0 %v1018
    %1227 = vmatprep.subr.mxu0 0.0
    %1228 = vmatpush1.msra.mxu0 %v1017
    %1229 = vmatprep.subr.mxu0 0.0
    %1230 = vmatpush1.msra.mxu0 %v1016
    %1231 = vmatprep.subr.mxu0 0.0
    %1232 = vmatpush2.msra.mxu0 0.0
    %1233 = vmatprep.subr.mxu0 0.0
    %1234 = vmatpush2.msra.mxu0 0.0
    %1235 = vmatprep.subr.mxu0 0.0
    %1236 = vmatpush2.msra.mxu0 0.0
    %1237 = vmatprep.subr.mxu0 0.0
    %1238 = vmatpush2.msra.mxu0 0.0
    %1239 = vmatprep.subr.mxu0 0.0
    %1240 = vmatpush2.msra.mxu0 0.0
    %1241 = vmatprep.subr.mxu0 0.0
    %1242 = vmatpush2.msra.mxu0 0.0
    %1243 = vmatprep.subr.mxu0 0.0
    %1244 = vmatpush2.msra.mxu0 0.0
    %1245 = vmatprep.subr.mxu0 0.0
    %1246 = vmatpush2.msra.mxu0 0.0
    %1247 = vmatprep.subr.mxu0 0.0
    %1248 = vmatpush2.msra.mxu0 0.0
    %1249 = vmatprep.subr.mxu0 0.0
    %1250 = vmatpush2.msra.mxu0 0.0
    %1251 = vmatprep.subr.mxu0 0.0
    %1252 = vmatpush2.msra.mxu0 0.0
    %1253 = vmatprep.subr.mxu0 0.0
    %1254 = vmatpush2.msra.mxu0 0.0
    %1255 = vmatprep.subr.mxu0 0.0
    %1256 = vmatpush2.msra.mxu0 0.0
    %1257 = vmatprep.subr.mxu0 0.0
    %1258 = vmatpush2.msra.mxu0 0.0
    %1259 = vmatprep.subr.mxu0 0.0
    %1260 = vmatpush2.msra.mxu0 0.0
    %1261 = vmatprep.subr.mxu0 0.0
    %1262 = vmatpush2.msra.mxu0 0.0
    %1263 = vmatprep.mubr.f32.mxu0 0.0
    %1264 = vmatmul.mubr.f32.gmra.mxu0 %v1194
    %v1265 = vpop.f32.mrf.mxu0
    %v1266 = vadd.f32 0.0, %v1265
    %v1267 = vpop.f32.mrf.mxu0
    %1268 = vmatprep.mubr.f32.mxu0 0.0
    %1269 = vmatmul.mubr.f32.gmra.mxu0 %v1197
    %v1270 = vpop.f32.mrf.mxu0
    %v1271 = vadd.f32 0.0, %v1270
    %v1272 = vpop.f32.mrf.mxu0
    %1273 = vdwg.mxu0
    %v1275 = vsel %vm1192, %v1103, 0
    %v1278 = vsel %vm1192, %v1108, 0
    %1280 = vmatprep.subr.mxu0 0.0
    %1281 = vmatpush1.msra.mxu0 0.0
    %1282 = vmatprep.subr.mxu0 0.0
    %1283 = vmatpush1.msra.mxu0 0.0
    %1284 = vmatprep.subr.mxu0 0.0
    %1285 = vmatpush1.msra.mxu0 0.0
    %1286 = vmatprep.subr.mxu0 0.0
    %1287 = vmatpush1.msra.mxu0 0.0
    %1288 = vmatprep.subr.mxu0 0.0
    %1289 = vmatpush1.msra.mxu0 0.0
    %1290 = vmatprep.subr.mxu0 0.0
    %1291 = vmatpush1.msra.mxu0 0.0
    %1292 = vmatprep.subr.mxu0 0.0
    %1293 = vmatpush1.msra.mxu0 0.0
    %1294 = vmatprep.subr.mxu0 0.0
    %1295 = vmatpush1.msra.mxu0 0.0
    %1296 = vmatprep.subr.mxu0 0.0
    %1297 = vmatpush1.msra.mxu0 0.0
    %1298 = vmatprep.subr.mxu0 0.0
    %1299 = vmatpush1.msra.mxu0 0.0
    %1300 = vmatprep.subr.mxu0 0.0
    %1301 = vmatpush1.msra.mxu0 0.0
    %1302 = vmatprep.subr.mxu0 0.0
    %1303 = vmatpush1.msra.mxu0 0.0
    %1304 = vmatprep.subr.mxu0 0.0
    %1305 = vmatpush1.msra.mxu0 %v1015
    %1306 = vmatprep.subr.mxu0 0.0
    %1307 = vmatpush1.msra.mxu0 %v1014
    %1308 = vmatprep.subr.mxu0 0.0
    %1309 = vmatpush1.msra.mxu0 %v1013
    %1310 = vmatprep.subr.mxu0 0.0
    %1311 = vmatpush1.msra.mxu0 %v1012
    %1312 = vmatprep.subr.mxu0 0.0
    %1313 = vmatpush2.msra.mxu0 0.0
    %1314 = vmatprep.subr.mxu0 0.0
    %1315 = vmatpush2.msra.mxu0 0.0
    %1316 = vmatprep.subr.mxu0 0.0
    %1317 = vmatpush2.msra.mxu0 0.0
    %1318 = vmatprep.subr.mxu0 0.0
    %1319 = vmatpush2.msra.mxu0 0.0
    %1320 = vmatprep.subr.mxu0 0.0
    %1321 = vmatpush2.msra.mxu0 0.0
    %1322 = vmatprep.subr.mxu0 0.0
    %1323 = vmatpush2.msra.mxu0 0.0
    %1324 = vmatprep.subr.mxu0 0.0
    %1325 = vmatpush2.msra.mxu0 0.0
    %1326 = vmatprep.subr.mxu0 0.0
    %1327 = vmatpush2.msra.mxu0 0.0
    %1328 = vmatprep.subr.mxu0 0.0
    %1329 = vmatpush2.msra.mxu0 0.0
    %1330 = vmatprep.subr.mxu0 0.0
    %1331 = vmatpush2.msra.mxu0 0.0
    %1332 = vmatprep.subr.mxu0 0.0
    %1333 = vmatpush2.msra.mxu0 0.0
    %1334 = vmatprep.subr.mxu0 0.0
    %1335 = vmatpush2.msra.mxu0 0.0
    %1336 = vmatprep.subr.mxu0 0.0
    %1337 = vmatpush2.msra.mxu0 0.0
    %1338 = vmatprep.subr.mxu0 0.0
    %1339 = vmatpush2.msra.mxu0 0.0
    %1340 = vmatprep.subr.mxu0 0.0
    %1341 = vmatpush2.msra.mxu0 0.0
    %1342 = vmatprep.subr.mxu0 0.0
    %1343 = vmatpush2.msra.mxu0 0.0
    %1344 = vmatprep.mubr.f32.mxu0 0.0
    %1345 = vmatmul.mubr.f32.gmra.mxu0 %v1275
    %v1346 = vpop.f32.mrf.mxu0
    %v1347 = vadd.f32 %v1266, %v1346
    %v1348 = vpop.f32.mrf.mxu0
    %1349 = vmatprep.mubr.f32.mxu0 0.0
    %1350 = vmatmul.mubr.f32.gmra.mxu0 %v1278
    %v1351 = vpop.f32.mrf.mxu0
    %v1352 = vadd.f32 %v1271, %v1351
    %v1353 = vpop.f32.mrf.mxu0
    %1354 = vdwg.mxu0
    %v1356 = vsel %vm1025, %v1010, 0
    %v1359 = vsel %vm1025, %v1011, 0
    %1361 = vmatprep.subr.mxu0 0.0
    %1362 = vmatpush1.msra.mxu0 0.0
    %1363 = vmatprep.subr.mxu0 0.0
    %1364 = vmatpush1.msra.mxu0 0.0
    %1365 = vmatprep.subr.mxu0 0.0
    %1366 = vmatpush1.msra.mxu0 0.0
    %1367 = vmatprep.subr.mxu0 0.0
    %1368 = vmatpush1.msra.mxu0 0.0
    %1369 = vmatprep.subr.mxu0 0.0
    %1370 = vmatpush1.msra.mxu0 0.0
    %1371 = vmatprep.subr.mxu0 0.0
    %1372 = vmatpush1.msra.mxu0 0.0
    %1373 = vmatprep.subr.mxu0 0.0
    %1374 = vmatpush1.msra.mxu0 0.0
    %1375 = vmatprep.subr.mxu0 0.0
    %1376 = vmatpush1.msra.mxu0 0.0
    %1377 = vmatprep.subr.mxu0 0.0
    %1378 = vmatpush1.msra.mxu0 0.0
    %1379 = vmatprep.subr.mxu0 0.0
    %1380 = vmatpush1.msra.mxu0 0.0
    %1381 = vmatprep.subr.mxu0 0.0
    %1382 = vmatpush1.msra.mxu0 0.0
    %1383 = vmatprep.subr.mxu0 0.0
    %1384 = vmatpush1.msra.mxu0 0.0
    %1385 = vmatprep.subr.mxu0 0.0
    %1386 = vmatpush1.msra.mxu0 0.0
    %1387 = vmatprep.subr.mxu0 0.0
    %1388 = vmatpush1.msra.mxu0 0.0
    %1389 = vmatprep.subr.mxu0 0.0
    %1390 = vmatpush1.msra.mxu0 0.0
    %1391 = vmatprep.subr.mxu0 0.0
    %1392 = vmatpush1.msra.mxu0 %v1034
    %1393 = vmatprep.subr.mxu0 0.0
    %1394 = vmatpush2.msra.mxu0 0.0
    %1395 = vmatprep.subr.mxu0 0.0
    %1396 = vmatpush2.msra.mxu0 0.0
    %1397 = vmatprep.subr.mxu0 0.0
    %1398 = vmatpush2.msra.mxu0 0.0
    %1399 = vmatprep.subr.mxu0 0.0
    %1400 = vmatpush2.msra.mxu0 0.0
    %1401 = vmatprep.subr.mxu0 0.0
    %1402 = vmatpush2.msra.mxu0 0.0
    %1403 = vmatprep.subr.mxu0 0.0
    %1404 = vmatpush2.msra.mxu0 0.0
    %1405 = vmatprep.subr.mxu0 0.0
    %1406 = vmatpush2.msra.mxu0 0.0
    %1407 = vmatprep.subr.mxu0 0.0
    %1408 = vmatpush2.msra.mxu0 0.0
    %1409 = vmatprep.subr.mxu0 0.0
    %1410 = vmatpush2.msra.mxu0 0.0
    %1411 = vmatprep.subr.mxu0 0.0
    %1412 = vmatpush2.msra.mxu0 0.0
    %1413 = vmatprep.subr.mxu0 0.0
    %1414 = vmatpush2.msra.mxu0 0.0
    %1415 = vmatprep.subr.mxu0 0.0
    %1416 = vmatpush2.msra.mxu0 0.0
    %1417 = vmatprep.subr.mxu0 0.0
    %1418 = vmatpush2.msra.mxu0 0.0
    %1419 = vmatprep.subr.mxu0 0.0
    %1420 = vmatpush2.msra.mxu0 0.0
    %1421 = vmatprep.subr.mxu0 0.0
    %1422 = vmatpush2.msra.mxu0 0.0
    %1423 = vmatprep.subr.mxu0 0.0
    %1424 = vmatpush2.msra.mxu0 0.0
    %1425 = vmatprep.mubr.f32.mxu0 0.0
    %1426 = vmatmul.mubr.f32.gmra.mxu0 %v1356
    %v1427 = vpop.f32.mrf.mxu0
    %v1428 = vadd.f32 0.0, %v1427
    %v1429 = vpop.f32.mrf.mxu0
    %1430 = vmatprep.mubr.f32.mxu0 0.0
    %1431 = vmatmul.mubr.f32.gmra.mxu0 %v1359
    %v1432 = vpop.f32.mrf.mxu0
    %v1433 = vadd.f32 0.0, %v1432
    %v1434 = vpop.f32.mrf.mxu0
    %1435 = vdwg.mxu0
    %v1437 = vsel %vm1192, %v1428, 0
    %v1440 = vsel %vm1192, %v1433, 0
    %1442 = vmatprep.subr.mxu0 0.0
    %1443 = vmatpush1.msra.mxu0 0.0
    %1444 = vmatprep.subr.mxu0 0.0
    %1445 = vmatpush1.msra.mxu0 0.0
    %1446 = vmatprep.subr.mxu0 0.0
    %1447 = vmatpush1.msra.mxu0 0.0
    %1448 = vmatprep.subr.mxu0 0.0
    %1449 = vmatpush1.msra.mxu0 0.0
    %1450 = vmatprep.subr.mxu0 0.0
    %1451 = vmatpush1.msra.mxu0 0.0
    %1452 = vmatprep.subr.mxu0 0.0
    %1453 = vmatpush1.msra.mxu0 0.0
    %1454 = vmatprep.subr.mxu0 0.0
    %1455 = vmatpush1.msra.mxu0 0.0
    %1456 = vmatprep.subr.mxu0 0.0
    %1457 = vmatpush1.msra.mxu0 0.0
    %1458 = vmatprep.subr.mxu0 0.0
    %1459 = vmatpush1.msra.mxu0 0.0
    %1460 = vmatprep.subr.mxu0 0.0
    %1461 = vmatpush1.msra.mxu0 0.0
    %1462 = vmatprep.subr.mxu0 0.0
    %1463 = vmatpush1.msra.mxu0 0.0
    %1464 = vmatprep.subr.mxu0 0.0
    %1465 = vmatpush1.msra.mxu0 0.0
    %1466 = vmatprep.subr.mxu0 0.0
    %1467 = vmatpush1.msra.mxu0 %v1023
    %1468 = vmatprep.subr.mxu0 0.0
    %1469 = vmatpush1.msra.mxu0 %v1022
    %1470 = vmatprep.subr.mxu0 0.0
    %1471 = vmatpush1.msra.mxu0 %v1021
    %1472 = vmatprep.subr.mxu0 0.0
    %1473 = vmatpush1.msra.mxu0 %v1020
    %1474 = vmatprep.subr.mxu0 0.0
    %1475 = vmatpush2.msra.mxu0 0.0
    %1476 = vmatprep.subr.mxu0 0.0
    %1477 = vmatpush2.msra.mxu0 0.0
    %1478 = vmatprep.subr.mxu0 0.0
    %1479 = vmatpush2.msra.mxu0 0.0
    %1480 = vmatprep.subr.mxu0 0.0
    %1481 = vmatpush2.msra.mxu0 0.0
    %1482 = vmatprep.subr.mxu0 0.0
    %1483 = vmatpush2.msra.mxu0 0.0
    %1484 = vmatprep.subr.mxu0 0.0
    %1485 = vmatpush2.msra.mxu0 0.0
    %1486 = vmatprep.subr.mxu0 0.0
    %1487 = vmatpush2.msra.mxu0 0.0
    %1488 = vmatprep.subr.mxu0 0.0
    %1489 = vmatpush2.msra.mxu0 0.0
    %1490 = vmatprep.subr.mxu0 0.0
    %1491 = vmatpush2.msra.mxu0 0.0
    %1492 = vmatprep.subr.mxu0 0.0
    %1493 = vmatpush2.msra.mxu0 0.0
    %1494 = vmatprep.subr.mxu0 0.0
    %1495 = vmatpush2.msra.mxu0 0.0
    %1496 = vmatprep.subr.mxu0 0.0
    %1497 = vmatpush2.msra.mxu0 0.0
    %1498 = vmatprep.subr.mxu0 0.0
    %1499 = vmatpush2.msra.mxu0 0.0
    %1500 = vmatprep.subr.mxu0 0.0
    %1501 = vmatpush2.msra.mxu0 0.0
    %1502 = vmatprep.subr.mxu0 0.0
    %1503 = vmatpush2.msra.mxu0 0.0
    %1504 = vmatprep.subr.mxu0 0.0
    %1505 = vmatpush2.msra.mxu0 0.0
    %1506 = vmatprep.mubr.f32.mxu0 0.0
    %1507 = vmatmul.mubr.f32.gmra.mxu0 %v1437
    %v1508 = vpop.f32.mrf.mxu0
    %v1509 = vadd.f32 0.0, %v1508
    %v1510 = vpop.f32.mrf.mxu0
    %1511 = vmatprep.mubr.f32.mxu0 0.0
    %1512 = vmatmul.mubr.f32.gmra.mxu0 %v1440
    %v1513 = vpop.f32.mrf.mxu0
    %v1514 = vadd.f32 0.0, %v1513
    %v1515 = vpop.f32.mrf.mxu0
    %1516 = vdwg.mxu0
    %v1517 = vadd.f32 %v1347, %v1509
    %v1518 = vadd.f32 %v1352, %v1514
    %v1520 = vlaneseq
    %v1521 = vshrl.u32 %v1520, 7
    %v1522 = vsub.s32 0, %v1521
    %v1523 = vrot.slane %v1024, %v1522
    %v1525 = vadd.f32 %v1517, %v1523
    %v1526 = vadd.f32 %v1518, %v1523
    %v1527 = vxor.u32 %v1525, 2147483648
    %v1528 = vxor.u32 %v1526, 2147483648
    %v1529 = vmul.f32 %v1527, 1.442695
    %v1530 = vpow.pop %v1529
    %v1531 = vmul.f32 %v1528, 1.442695
    %v1532 = vpow.pop %v1531
    %v1533 = vadd.f32 %v1530, 1.0
    %v1534 = vadd.f32 %v1532, 1.0
    %v1535 = vrcp.pop %v1533
    %v1536 = vmul.f32 1.0, %v1535
    %v1537 = vrcp.pop %v1534
    %v1538 = vmul.f32 1.0, %v1537
    %v1539 = vmul.f32 %v36, %v1536
    %v1540 = vmul.f32 %v37, %v1538
    %1541 = vst [vmem:[#allocation2] sm:$0xff] %v1539
    %1542 = vst [vmem:[#allocation2 + $0x8] sm:$0xff] %v1540
    // Predicated region
    $region42: #{tpu_custom_call.1} parent=1 // pred_check
      _
    $region43: #{tpu_custom_call.1} parent=1 // pred_check_branch
      %1544 = sbr.rel (0) target = $region45
    $region44: #{tpu_custom_call.1} parent=1 // pred_region
      %s1546 = ssub.s32 256, 256
      %1547 = vsyncadd [#allocation3], %s1546
      %s1548 = sshll.u32 [#allocation2], 4
      %s1549 = int_to_ptr.vmem [resolvable:$true] %s1548
      %1554 = dma.vmem_to_hbm [thread:$0]  %s1549, 256, %s10, [#allocation3], 128, 128, 8
    $region45: #{tpu_custom_call.1} parent=1 // pred_fallthru
      _
    // Predicated region
    $region46: #{tpu_custom_call.1} parent=1 // pred_check
      _
    $region47: #{tpu_custom_call.1} parent=1 // pred_check_branch
      %1556 = sbr.rel (0) target = $region49
    $region48: #{tpu_custom_call.1} parent=1 // pred_region
      %1557 = dma.done [#allocation3], 256
    $region49: #{tpu_custom_call.1} parent=1 // pred_fallthru
      _
    %1558 = vsyncpa [#allocation3], 1

</llo_original>
